<compile_context>
chip_gen: v5e
topology: v5e:2x2
jax: 0.10.0
libtpu: 0.0.40
codegen_flags: <defaults>
</compile_context>

<pallas_src>
import functools

import jax
import jax.numpy as jnp
from jax import lax
from jax.experimental import pallas as pl
from jax.experimental.pallas import tpu as pltpu


def _resnet_block_kernel(x_ref, w1_ref, w2_ref, scale_ref, bias_ref, out_ref,
                         *, H, W, C):
    """One batch element: [pad->conv3x3->BN->ReLU->pad->conv3x3->BN] + residual."""
    x = x_ref[0]                                   # (H, W, C) float32

    def reflect_pad(a):
        # 1-pixel reflection pad (H, W, C) -> (H+2, W+2, C), done in-kernel.
        rows = jnp.concatenate([a[1:2], a, a[H - 2:H - 1]], axis=0)
        return jnp.concatenate(
            [rows[:, 1:2, :], rows, rows[:, W - 2:W - 1, :]], axis=1)

    def conv3x3_bn(a, w_ref, scale, bias, relu):
        ap = reflect_pad(a)                        # (H+2, W+2, C) f32
        # Column im2col: lane-axis concat of the 3 adjacent columns -> K = 3*C.
        cols = jnp.concatenate([ap[:, dx:dx + W, :] for dx in range(3)],
                               axis=-1)            # (H+2, W, 3C)
        acc = jnp.zeros((H * W, C), jnp.float32)
        for dy in range(3):                        # dy shift is on a free dim
            lhs = cols[dy:dy + H].reshape(H * W, 3 * C).astype(jnp.bfloat16)
            acc = acc + jnp.dot(lhs, w_ref[dy],
                                preferred_element_type=jnp.float32)
        acc = acc * scale + bias                   # folded eval-mode BatchNorm
        if relu:
            acc = jnp.maximum(acc, 0.0)
        return acc.reshape(H, W, C)

    h = conv3x3_bn(x, w1_ref, scale_ref[0:1, :], bias_ref[0:1, :], relu=True)
    y = conv3x3_bn(h, w2_ref, scale_ref[1:2, :], bias_ref[1:2, :], relu=False)
    out_ref[0] = (x + y).astype(out_ref.dtype)     # residual add in float32


def _fold_bn(conv_bias, gamma, beta, running_mean, running_var, eps=1e-5):
    """Fold conv bias + BatchNorm(eval) into per-channel scale/bias."""
    scale = gamma / jnp.sqrt(running_var + eps)
    bias = scale * (conv_bias - running_mean) + beta
    return scale, bias


def _to_col_weights(w):
    """PyTorch (Cout, Cin, 3, 3) -> (3 [dy], 3*Cin [dx-major, ci-minor], Cout)."""
    cout, cin = w.shape[0], w.shape[1]
    return jnp.transpose(w, (2, 3, 1, 0)).reshape(3, 3 * cin, cout)


def resnet_block_forward(x_nchw, params):
    """Forward pass of ResnetBlock (eval mode).  x_nchw: (B, C, H, W) float32."""
    x = jnp.transpose(x_nchw, (0, 2, 3, 1))        # -> NHWC
    B, H, W, C = x.shape

    w1 = _to_col_weights(params["w1"]).astype(jnp.bfloat16)
    w2 = _to_col_weights(params["w2"]).astype(jnp.bfloat16)
    s1, b1 = _fold_bn(params["b1"], params["gamma1"], params["beta1"],
                      params["mean1"], params["var1"])
    s2, b2 = _fold_bn(params["b2"], params["gamma2"], params["beta2"],
                      params["mean2"], params["var2"])
    scales = jnp.stack([s1, s2]).astype(jnp.float32)   # (2, C)
    biases = jnp.stack([b1, b2]).astype(jnp.float32)   # (2, C)

    kernel = functools.partial(_resnet_block_kernel, H=H, W=W, C=C)

    out = pl.pallas_call(
        kernel,
        out_shape=jax.ShapeDtypeStruct((B, H, W, C), x.dtype),
        grid_spec=pltpu.PrefetchScalarGridSpec(
            num_scalar_prefetch=0,
            grid=(B,),
            in_specs=[
                pl.BlockSpec((1, H, W, C), lambda b: (b, 0, 0, 0)),
                pl.BlockSpec((3, 3 * C, C), lambda b: (0, 0, 0)),
                pl.BlockSpec((3, 3 * C, C), lambda b: (0, 0, 0)),
                pl.BlockSpec((2, C), lambda b: (0, 0)),
                pl.BlockSpec((2, C), lambda b: (0, 0)),
            ],
            out_specs=pl.BlockSpec((1, H, W, C), lambda b: (b, 0, 0, 0)),
        ),
        compiler_params=pltpu.CompilerParams(
            dimension_semantics=("parallel",),
            # Safe on v5e/v6e/v7x; re-derive per generation for production
            # shapes (v7x physical VMEM is 64 MiB).
            vmem_limit_bytes=32 * 1024 * 1024,
        ),
    )(x, w1, w2, scales, biases)

    return jnp.transpose(out, (0, 3, 1, 2))        # -> NCHW


def _reflect_pad_nhwc(x):
    return jnp.pad(x, ((0, 0), (1, 1), (1, 1), (0, 0)), mode="reflect")


def _reference_forward(x_nchw, params, eps=1e-5):
    """Pure-JAX float32 reference (lax.conv) mirroring the PyTorch module (eval)."""
    x = jnp.transpose(x_nchw, (0, 2, 3, 1))

    def conv_bn(inp, w, b, gamma, beta, mean, var, relu):
        pad = _reflect_pad_nhwc(inp)
        k = jnp.transpose(w, (2, 3, 1, 0))  # HWIO
        y = lax.conv_general_dilated(
            pad, k, window_strides=(1, 1), padding="VALID",
            dimension_numbers=("NHWC", "HWIO", "NHWC"))
        y = y + b
        y = (y - mean) / jnp.sqrt(var + eps) * gamma + beta
        return jnp.maximum(y, 0.0) if relu else y

    h = conv_bn(x, params["w1"], params["b1"], params["gamma1"],
                params["beta1"], params["mean1"], params["var1"], True)
    o = conv_bn(h, params["w2"], params["b2"], params["gamma2"],
                params["beta2"], params["mean2"], params["var2"], False)
    return jnp.transpose(x + o, (0, 3, 1, 2))


def make_params(key, dim):
    ks = jax.random.split(key, 6)
    return {
        "w1": jax.random.normal(ks[0], (dim, dim, 3, 3), jnp.float32) * 0.1,
        "b1": jax.random.normal(ks[1], (dim,), jnp.float32) * 0.1,
        "w2": jax.random.normal(ks[2], (dim, dim, 3, 3), jnp.float32) * 0.1,
        "b2": jax.random.normal(ks[3], (dim,), jnp.float32) * 0.1,
        "gamma1": jnp.ones((dim,), jnp.float32) * 1.1,
        "beta1": jnp.full((dim,), 0.05, jnp.float32),
        "mean1": jax.random.normal(ks[4], (dim,), jnp.float32) * 0.05,
        "var1": jnp.ones((dim,), jnp.float32) * 0.9,
        "gamma2": jnp.ones((dim,), jnp.float32) * 0.95,
        "beta2": jnp.full((dim,), -0.02, jnp.float32),
        "mean2": jax.random.normal(ks[5], (dim,), jnp.float32) * 0.05,
        "var2": jnp.ones((dim,), jnp.float32) * 1.1,
    }


if __name__ == "__main__":
    B, C, H, W = 2, 4, 16, 16
    key = jax.random.PRNGKey(0)
    k_x, k_p = jax.random.split(key)
    x = jax.random.normal(k_x, (B, C, H, W), jnp.float32)
    params = make_params(k_p, C)

    out = jax.block_until_ready(resnet_block_forward(x, params))
    ref = jax.block_until_ready(_reference_forward(x, params))

    assert out.shape == (B, C, H, W)
    # bf16 MXU operands vs. the pure-f32 reference -> loose tolerance.
    max_err = float(jnp.max(jnp.abs(out - ref)))
    assert jnp.allclose(out, ref, atol=5e-2, rtol=5e-2), max_err
    print("KERNEL_OK")
</pallas_src>

<mosaic_0001>
module attributes {stable_mosaic.version = 11 : i64} {
  func.func @_resnet_block_kernel(%arg0: i32, %arg1: memref<1x16x16x4xf32, #tpu.memory_space<vmem>>, %arg2: memref<3x12x4xbf16, #tpu.memory_space<vmem>>, %arg3: memref<3x12x4xbf16, #tpu.memory_space<vmem>>, %arg4: memref<2x4xf32, #tpu.memory_space<vmem>>, %arg5: memref<2x4xf32, #tpu.memory_space<vmem>>, %arg6: memref<1x16x16x4xf32, #tpu.memory_space<vmem>>) attributes {dimension_semantics = [#tpu.dimension_semantics<parallel>], iteration_bounds = array<i64: 2>, scalar_prefetch = 0 : i64, scratch_operands = 0 : i64, tpu.core_type = #tpu.core_type<tc>, window_params = [{transform_indices = @transform_0, window_bounds = array<i64: 1, 16, 16, 4>}, {pipeline_mode = #tpu.pipeline_mode<synchronous>, transform_indices = @transform_1, window_bounds = array<i64: 3, 12, 4>}, {pipeline_mode = #tpu.pipeline_mode<synchronous>, transform_indices = @transform_2, window_bounds = array<i64: 3, 12, 4>}, {pipeline_mode = #tpu.pipeline_mode<synchronous>, transform_indices = @transform_3, window_bounds = array<i64: 2, 4>}, {pipeline_mode = #tpu.pipeline_mode<synchronous>, transform_indices = @transform_4, window_bounds = array<i64: 2, 4>}, {transform_indices = @transform_5, window_bounds = array<i64: 1, 16, 16, 4>}]} {
    %c0 = arith.constant 0 : index
    %c0_0 = arith.constant 0 : index
    %c0_1 = arith.constant 0 : index
    %c0_2 = arith.constant 0 : index
    %0 = vector.load %arg1[%c0, %c0_0, %c0_1, %c0_2] : memref<1x16x16x4xf32, #tpu.memory_space<vmem>>, vector<1x16x16x4xf32>
    %1 = vector.shape_cast %0 : vector<1x16x16x4xf32> to vector<16x16x4xf32>
    %c0_3 = arith.constant 0 : index
    %c0_4 = arith.constant 0 : index
    %2 = vector.load %arg4[%c0_3, %c0_4] : memref<2x4xf32, #tpu.memory_space<vmem>>, vector<1x4xf32>
    %c0_5 = arith.constant 0 : index
    %c0_6 = arith.constant 0 : index
    %3 = vector.load %arg5[%c0_5, %c0_6] : memref<2x4xf32, #tpu.memory_space<vmem>>, vector<1x4xf32>
    %4 = vector.extract_strided_slice %1 {offsets = [1, 0, 0], sizes = [1, 16, 4], strides = [1, 1, 1]} : vector<16x16x4xf32> to vector<1x16x4xf32>
    %5 = vector.extract_strided_slice %1 {offsets = [14, 0, 0], sizes = [1, 16, 4], strides = [1, 1, 1]} : vector<16x16x4xf32> to vector<1x16x4xf32>
    %6 = tpu.concatenate %4, %1, %5 in 0 : vector<1x16x4xf32>, vector<16x16x4xf32>, vector<1x16x4xf32> -> vector<18x16x4xf32>
    %7 = vector.extract_strided_slice %6 {offsets = [0, 1, 0], sizes = [18, 1, 4], strides = [1, 1, 1]} : vector<18x16x4xf32> to vector<18x1x4xf32>
    %8 = vector.extract_strided_slice %6 {offsets = [0, 14, 0], sizes = [18, 1, 4], strides = [1, 1, 1]} : vector<18x16x4xf32> to vector<18x1x4xf32>
    %9 = tpu.concatenate %7, %6, %8 in 1 : vector<18x1x4xf32>, vector<18x16x4xf32>, vector<18x1x4xf32> -> vector<18x18x4xf32>
    %10 = vector.extract_strided_slice %9 {offsets = [0, 0, 0], sizes = [18, 16, 4], strides = [1, 1, 1]} : vector<18x18x4xf32> to vector<18x16x4xf32>
    %11 = vector.extract_strided_slice %9 {offsets = [0, 1, 0], sizes = [18, 16, 4], strides = [1, 1, 1]} : vector<18x18x4xf32> to vector<18x16x4xf32>
    %12 = vector.extract_strided_slice %9 {offsets = [0, 2, 0], sizes = [18, 16, 4], strides = [1, 1, 1]} : vector<18x18x4xf32> to vector<18x16x4xf32>
    %13 = tpu.concatenate %10, %11, %12 in 2 : vector<18x16x4xf32>, vector<18x16x4xf32>, vector<18x16x4xf32> -> vector<18x16x12xf32>
    %cst = arith.constant 0.000000e+00 : f32
    %14 = vector.broadcast %cst : f32 to vector<256x4xf32>
    %15 = vector.extract_strided_slice %13 {offsets = [0, 0, 0], sizes = [16, 16, 12], strides = [1, 1, 1]} : vector<18x16x12xf32> to vector<16x16x12xf32>
    %16 = vector.shape_cast %15 : vector<16x16x12xf32> to vector<256x12xf32>
    %17 = arith.truncf %16 : vector<256x12xf32> to vector<256x12xbf16>
    %c0_7 = arith.constant 0 : index
    %c0_8 = arith.constant 0 : index
    %c0_9 = arith.constant 0 : index
    %18 = vector.load %arg2[%c0_7, %c0_8, %c0_9] : memref<3x12x4xbf16, #tpu.memory_space<vmem>>, vector<1x12x4xbf16>
    %19 = vector.shape_cast %18 : vector<1x12x4xbf16> to vector<12x4xbf16>
    %cst_10 = arith.constant dense<0.000000e+00> : vector<256x4xf32>
    %20 = tpu.matmul %17, %19, %cst_10 {dimension_numbers = #tpu.dot_dimension_numbers<[1], [0], [0], [1], [0, 0, 1, 1], [], []>} : vector<256x12xbf16>, vector<12x4xbf16>, vector<256x4xf32> -> vector<256x4xf32>
    %21 = arith.addf %14, %20 : vector<256x4xf32>
    %22 = vector.extract_strided_slice %13 {offsets = [1, 0, 0], sizes = [16, 16, 12], strides = [1, 1, 1]} : vector<18x16x12xf32> to vector<16x16x12xf32>
    %23 = vector.shape_cast %22 : vector<16x16x12xf32> to vector<256x12xf32>
    %24 = arith.truncf %23 : vector<256x12xf32> to vector<256x12xbf16>
    %c1 = arith.constant 1 : index
    %c0_11 = arith.constant 0 : index
    %c0_12 = arith.constant 0 : index
    %25 = vector.load %arg2[%c1, %c0_11, %c0_12] : memref<3x12x4xbf16, #tpu.memory_space<vmem>>, vector<1x12x4xbf16>
    %26 = vector.shape_cast %25 : vector<1x12x4xbf16> to vector<12x4xbf16>
    %cst_13 = arith.constant dense<0.000000e+00> : vector<256x4xf32>
    %27 = tpu.matmul %24, %26, %cst_13 {dimension_numbers = #tpu.dot_dimension_numbers<[1], [0], [0], [1], [0, 0, 1, 1], [], []>} : vector<256x12xbf16>, vector<12x4xbf16>, vector<256x4xf32> -> vector<256x4xf32>
    %28 = arith.addf %21, %27 : vector<256x4xf32>
    %29 = vector.extract_strided_slice %13 {offsets = [2, 0, 0], sizes = [16, 16, 12], strides = [1, 1, 1]} : vector<18x16x12xf32> to vector<16x16x12xf32>
    %30 = vector.shape_cast %29 : vector<16x16x12xf32> to vector<256x12xf32>
    %31 = arith.truncf %30 : vector<256x12xf32> to vector<256x12xbf16>
    %c2 = arith.constant 2 : index
    %c0_14 = arith.constant 0 : index
    %c0_15 = arith.constant 0 : index
    %32 = vector.load %arg2[%c2, %c0_14, %c0_15] : memref<3x12x4xbf16, #tpu.memory_space<vmem>>, vector<1x12x4xbf16>
    %33 = vector.shape_cast %32 : vector<1x12x4xbf16> to vector<12x4xbf16>
    %cst_16 = arith.constant dense<0.000000e+00> : vector<256x4xf32>
    %34 = tpu.matmul %31, %33, %cst_16 {dimension_numbers = #tpu.dot_dimension_numbers<[1], [0], [0], [1], [0, 0, 1, 1], [], []>} : vector<256x12xbf16>, vector<12x4xbf16>, vector<256x4xf32> -> vector<256x4xf32>
    %35 = arith.addf %28, %34 : vector<256x4xf32>
    %36 = vector.broadcast %2 : vector<1x4xf32> to vector<256x4xf32>
    %37 = arith.mulf %35, %36 : vector<256x4xf32>
    %38 = vector.broadcast %3 : vector<1x4xf32> to vector<256x4xf32>
    %39 = arith.addf %37, %38 : vector<256x4xf32>
    %cst_17 = arith.constant 0.000000e+00 : f32
    %40 = vector.broadcast %cst_17 : f32 to vector<256x4xf32>
    %41 = arith.maximumf %39, %40 : vector<256x4xf32>
    %42 = vector.shape_cast %41 : vector<256x4xf32> to vector<16x16x4xf32>
    %c1_18 = arith.constant 1 : index
    %c0_19 = arith.constant 0 : index
    %43 = vector.load %arg4[%c1_18, %c0_19] : memref<2x4xf32, #tpu.memory_space<vmem>>, vector<1x4xf32>
    %c1_20 = arith.constant 1 : index
    %c0_21 = arith.constant 0 : index
    %44 = vector.load %arg5[%c1_20, %c0_21] : memref<2x4xf32, #tpu.memory_space<vmem>>, vector<1x4xf32>
    %45 = vector.extract_strided_slice %42 {offsets = [1, 0, 0], sizes = [1, 16, 4], strides = [1, 1, 1]} : vector<16x16x4xf32> to vector<1x16x4xf32>
    %46 = vector.extract_strided_slice %42 {offsets = [14, 0, 0], sizes = [1, 16, 4], strides = [1, 1, 1]} : vector<16x16x4xf32> to vector<1x16x4xf32>
    %47 = tpu.concatenate %45, %42, %46 in 0 : vector<1x16x4xf32>, vector<16x16x4xf32>, vector<1x16x4xf32> -> vector<18x16x4xf32>
    %48 = vector.extract_strided_slice %47 {offsets = [0, 1, 0], sizes = [18, 1, 4], strides = [1, 1, 1]} : vector<18x16x4xf32> to vector<18x1x4xf32>
    %49 = vector.extract_strided_slice %47 {offsets = [0, 14, 0], sizes = [18, 1, 4], strides = [1, 1, 1]} : vector<18x16x4xf32> to vector<18x1x4xf32>
    %50 = tpu.concatenate %48, %47, %49 in 1 : vector<18x1x4xf32>, vector<18x16x4xf32>, vector<18x1x4xf32> -> vector<18x18x4xf32>
    %51 = vector.extract_strided_slice %50 {offsets = [0, 0, 0], sizes = [18, 16, 4], strides = [1, 1, 1]} : vector<18x18x4xf32> to vector<18x16x4xf32>
    %52 = vector.extract_strided_slice %50 {offsets = [0, 1, 0], sizes = [18, 16, 4], strides = [1, 1, 1]} : vector<18x18x4xf32> to vector<18x16x4xf32>
    %53 = vector.extract_strided_slice %50 {offsets = [0, 2, 0], sizes = [18, 16, 4], strides = [1, 1, 1]} : vector<18x18x4xf32> to vector<18x16x4xf32>
    %54 = tpu.concatenate %51, %52, %53 in 2 : vector<18x16x4xf32>, vector<18x16x4xf32>, vector<18x16x4xf32> -> vector<18x16x12xf32>
    %cst_22 = arith.constant 0.000000e+00 : f32
    %55 = vector.broadcast %cst_22 : f32 to vector<256x4xf32>
    %56 = vector.extract_strided_slice %54 {offsets = [0, 0, 0], sizes = [16, 16, 12], strides = [1, 1, 1]} : vector<18x16x12xf32> to vector<16x16x12xf32>
    %57 = vector.shape_cast %56 : vector<16x16x12xf32> to vector<256x12xf32>
    %58 = arith.truncf %57 : vector<256x12xf32> to vector<256x12xbf16>
    %c0_23 = arith.constant 0 : index
    %c0_24 = arith.constant 0 : index
    %c0_25 = arith.constant 0 : index
    %59 = vector.load %arg3[%c0_23, %c0_24, %c0_25] : memref<3x12x4xbf16, #tpu.memory_space<vmem>>, vector<1x12x4xbf16>
    %60 = vector.shape_cast %59 : vector<1x12x4xbf16> to vector<12x4xbf16>
    %cst_26 = arith.constant dense<0.000000e+00> : vector<256x4xf32>
    %61 = tpu.matmul %58, %60, %cst_26 {dimension_numbers = #tpu.dot_dimension_numbers<[1], [0], [0], [1], [0, 0, 1, 1], [], []>} : vector<256x12xbf16>, vector<12x4xbf16>, vector<256x4xf32> -> vector<256x4xf32>
    %62 = arith.addf %55, %61 : vector<256x4xf32>
    %63 = vector.extract_strided_slice %54 {offsets = [1, 0, 0], sizes = [16, 16, 12], strides = [1, 1, 1]} : vector<18x16x12xf32> to vector<16x16x12xf32>
    %64 = vector.shape_cast %63 : vector<16x16x12xf32> to vector<256x12xf32>
    %65 = arith.truncf %64 : vector<256x12xf32> to vector<256x12xbf16>
    %c1_27 = arith.constant 1 : index
    %c0_28 = arith.constant 0 : index
    %c0_29 = arith.constant 0 : index
    %66 = vector.load %arg3[%c1_27, %c0_28, %c0_29] : memref<3x12x4xbf16, #tpu.memory_space<vmem>>, vector<1x12x4xbf16>
    %67 = vector.shape_cast %66 : vector<1x12x4xbf16> to vector<12x4xbf16>
    %cst_30 = arith.constant dense<0.000000e+00> : vector<256x4xf32>
    %68 = tpu.matmul %65, %67, %cst_30 {dimension_numbers = #tpu.dot_dimension_numbers<[1], [0], [0], [1], [0, 0, 1, 1], [], []>} : vector<256x12xbf16>, vector<12x4xbf16>, vector<256x4xf32> -> vector<256x4xf32>
    %69 = arith.addf %62, %68 : vector<256x4xf32>
    %70 = vector.extract_strided_slice %54 {offsets = [2, 0, 0], sizes = [16, 16, 12], strides = [1, 1, 1]} : vector<18x16x12xf32> to vector<16x16x12xf32>
    %71 = vector.shape_cast %70 : vector<16x16x12xf32> to vector<256x12xf32>
    %72 = arith.truncf %71 : vector<256x12xf32> to vector<256x12xbf16>
    %c2_31 = arith.constant 2 : index
    %c0_32 = arith.constant 0 : index
    %c0_33 = arith.constant 0 : index
    %73 = vector.load %arg3[%c2_31, %c0_32, %c0_33] : memref<3x12x4xbf16, #tpu.memory_space<vmem>>, vector<1x12x4xbf16>
    %74 = vector.shape_cast %73 : vector<1x12x4xbf16> to vector<12x4xbf16>
    %cst_34 = arith.constant dense<0.000000e+00> : vector<256x4xf32>
    %75 = tpu.matmul %72, %74, %cst_34 {dimension_numbers = #tpu.dot_dimension_numbers<[1], [0], [0], [1], [0, 0, 1, 1], [], []>} : vector<256x12xbf16>, vector<12x4xbf16>, vector<256x4xf32> -> vector<256x4xf32>
    %76 = arith.addf %69, %75 : vector<256x4xf32>
    %77 = vector.broadcast %43 : vector<1x4xf32> to vector<256x4xf32>
    %78 = arith.mulf %76, %77 : vector<256x4xf32>
    %79 = vector.broadcast %44 : vector<1x4xf32> to vector<256x4xf32>
    %80 = arith.addf %78, %79 : vector<256x4xf32>
    %81 = vector.shape_cast %80 : vector<256x4xf32> to vector<16x16x4xf32>
    %82 = arith.addf %1, %81 : vector<16x16x4xf32>
    %c0_35 = arith.constant 0 : index
    %c0_36 = arith.constant 0 : index
    %c0_37 = arith.constant 0 : index
    %c0_38 = arith.constant 0 : index
    %83 = vector.load %arg6[%c0_35, %c0_36, %c0_37, %c0_38] : memref<1x16x16x4xf32, #tpu.memory_space<vmem>>, vector<1x16x16x4xf32>
    %84 = vector.shape_cast %83 : vector<1x16x16x4xf32> to vector<16x16x4xf32>
    %85 = vector.shape_cast %82 : vector<16x16x4xf32> to vector<1x16x16x4xf32>
    tpu.vector_store %arg6[%c0_35, %c0_36, %c0_37, %c0_38], %85 {strides = array<i32>} : memref<1x16x16x4xf32, #tpu.memory_space<vmem>>, vector<1x16x16x4xf32>,
    return
  }
  func.func @transform_0(%arg0: i32) -> (i32, i32, i32, i32) {
    %c0_i32 = arith.constant 0 : i32
    %c0_i32_0 = arith.constant 0 : i32
    %c0_i32_1 = arith.constant 0 : i32
    %c0_i32_2 = arith.constant 0 : i32
    return %arg0, %c0_i32, %c0_i32_0, %c0_i32_1 : i32, i32, i32, i32
  }
  func.func @transform_1(%arg0: i32) -> (i32, i32, i32) {
    %c0_i32 = arith.constant 0 : i32
    %c0_i32_0 = arith.constant 0 : i32
    %c0_i32_1 = arith.constant 0 : i32
    %c0_i32_2 = arith.constant 0 : i32
    return %c0_i32, %c0_i32_0, %c0_i32_1 : i32, i32, i32
  }
  func.func @transform_2(%arg0: i32) -> (i32, i32, i32) {
    %c0_i32 = arith.constant 0 : i32
    %c0_i32_0 = arith.constant 0 : i32
    %c0_i32_1 = arith.constant 0 : i32
    %c0_i32_2 = arith.constant 0 : i32
    return %c0_i32, %c0_i32_0, %c0_i32_1 : i32, i32, i32
  }
  func.func @transform_3(%arg0: i32) -> (i32, i32) {
    %c0_i32 = arith.constant 0 : i32
    %c0_i32_0 = arith.constant 0 : i32
    %c0_i32_1 = arith.constant 0 : i32
    return %c0_i32, %c0_i32_0 : i32, i32
  }
  func.func @transform_4(%arg0: i32) -> (i32, i32) {
    %c0_i32 = arith.constant 0 : i32
    %c0_i32_0 = arith.constant 0 : i32
    %c0_i32_1 = arith.constant 0 : i32
    return %c0_i32, %c0_i32_0 : i32, i32
  }
  func.func @transform_5(%arg0: i32) -> (i32, i32, i32, i32) {
    %c0_i32 = arith.constant 0 : i32
    %c0_i32_0 = arith.constant 0 : i32
    %c0_i32_1 = arith.constant 0 : i32
    %c0_i32_2 = arith.constant 0 : i32
    return %arg0, %c0_i32, %c0_i32_0, %c0_i32_1 : i32, i32, i32, i32
  }
}

</mosaic_0001>

<llo_original>
// kernel: tpu_custom_call.1
$region0: #{tpu_custom_call.1}
  #allocation0 [shape = 'u32[]', space=smem, size = 0x4, offset = 0x4, fixed_abs, tag = 'smem constant byte address 0x4 - core index']
  #allocation1 [shape = 'u32[72,128]{1,0:T(1,128)}', space=vmem, size = 0x9000, scoped, tag = 'internal scratch']
  %s0 = inlined_call_operand.vmem [shape: f32[2,16,16,4], index: 0, kind: input, shape index: {}]
  %s1 = inlined_call_operand.vmem [shape: bf16[3,12,4], index: 1, kind: input, shape index: {}]
  %s2 = inlined_call_operand.vmem [shape: bf16[3,12,4], index: 2, kind: input, shape index: {}]
  %s3 = inlined_call_operand.vmem [shape: f32[2,4], index: 3, kind: input, shape index: {}]
  %s4 = inlined_call_operand.vmem [shape: f32[2,4], index: 4, kind: input, shape index: {}]
  %s5 = inlined_call_operand.vmem [shape: f32[2,16,16,4], index: 5, kind: output, shape index: {}]
  %s6 = sld [smem:[#allocation0]]
  $region53: #{tpu_custom_call.1} parent=0
    _
  %s8 = ssub.s32 1, %s6
  %s9 = scalar_select 0, %s8, %s6
  loop: start=0, step=1, limit=4
  $region2: #{tpu_custom_call.1} parent=0 // loop_pre_header
    _
  $region3: #{tpu_custom_call.1} parent=0 // loop_header
    %s11 = sphi 0, %s15
    %p12 = scmp.ge.s32.totalorder %s11, 4
    %s21 = sphi 0, %s23
    %s24 = sphi 0, %s21
    %s25 = sphi 0, %s24
    %s41 = sphi 0, %s25
    %s45 = sphi 0, %s45
    %s47 = sphi 0, %s45
    %s48 = sphi 0, %s47
    %s62 = sphi 0, %s48
    %s66 = sphi 0, %s66
    %s68 = sphi 0, %s66
    %s69 = sphi 0, %s68
    %s83 = sphi 0, %s69
    %s87 = sphi 0, %s87
    %s89 = sphi 0, %s87
    %s90 = sphi 0, %s89
    %s104 = sphi 0, %s90
    %s108 = sphi 0, %s108
    %s110 = sphi 0, %s108
    %s111 = sphi 0, %s110
    %s125 = sphi 0, %s111
    %s131 = sphi 0, %s133
    %s134 = sphi 0, %s131
    %s135 = sphi 0, %s134
    %s151 = sphi 0, %s135
  $region4: #{tpu_custom_call.1} parent=0 // loop_header_branch
    %14 = sbr.rel (%p12) target = $region8
  $region5: #{tpu_custom_call.1} parent=0 // loop_body
    %s16 = ssub.s32 %s11, 1
    %s17 = ssub.s32 %s11, 2
    %s18 = sadd.s32 %s11, 1
    %s19 = ssub.s32 %s11, %s18
    %p20 = scmp.eq.s32.totalorder %s19, 0
    %s22 = sadd.s32 %s21, 1
    %s23 = scalar_select %p20, %s21, %s22
    %p26 = pneg %p20
    %p27 = scmp.eq.s32.totalorder %s11, 1
    %p28 = por %p26, %p27
    %p29 = scmp.ne.s32.totalorder %s21, %s24
    %p30 = scmp.eq.s32.totalorder %s11, 0
    %p31 = por %p29, %p30
    %p32 = scmp.ne.s32.totalorder %s21, %s24
    %p33 = scmp.eq.s32.totalorder %s16, 1
    %p34 = por %p32, %p33
    %p35 = scmp.ne.s32.totalorder %s24, %s25
    %p36 = scmp.eq.s32.totalorder %s16, 0
    %p37 = por %p35, %p36
    %p38 = scmp.ne.s32.totalorder %s24, %s25
    %p39 = scmp.eq.s32.totalorder %s17, 1
    %p40 = por %p38, %p39
    %p42 = scmp.ne.s32.totalorder %s25, %s41
    %p43 = scmp.eq.s32.totalorder %s17, 0
    %p44 = por %p42, %p43
    %s46 = sadd.s32 %s45, 1
    %p49 = scmp.eq.s32.totalorder %s11, 1
    %p50 = scmp.ne.s32.totalorder %s45, %s47
    %p51 = scmp.eq.s32.totalorder %s11, 0
    %p52 = por %p50, %p51
    %p53 = scmp.ne.s32.totalorder %s45, %s47
    %p54 = scmp.eq.s32.totalorder %s16, 1
    %p55 = por %p53, %p54
    %p56 = scmp.ne.s32.totalorder %s47, %s48
    %p57 = scmp.eq.s32.totalorder %s16, 0
    %p58 = por %p56, %p57
    %p59 = scmp.ne.s32.totalorder %s47, %s48
    %p60 = scmp.eq.s32.totalorder %s17, 1
    %p61 = por %p59, %p60
    %p63 = scmp.ne.s32.totalorder %s48, %s62
    %p64 = scmp.eq.s32.totalorder %s17, 0
    %p65 = por %p63, %p64
    %s67 = sadd.s32 %s66, 1
    %p70 = scmp.eq.s32.totalorder %s11, 1
    %p71 = scmp.ne.s32.totalorder %s66, %s68
    %p72 = scmp.eq.s32.totalorder %s11, 0
    %p73 = por %p71, %p72
    %p74 = scmp.ne.s32.totalorder %s66, %s68
    %p75 = scmp.eq.s32.totalorder %s16, 1
    %p76 = por %p74, %p75
    %p77 = scmp.ne.s32.totalorder %s68, %s69
    %p78 = scmp.eq.s32.totalorder %s16, 0
    %p79 = por %p77, %p78
    %p80 = scmp.ne.s32.totalorder %s68, %s69
    %p81 = scmp.eq.s32.totalorder %s17, 1
    %p82 = por %p80, %p81
    %p84 = scmp.ne.s32.totalorder %s69, %s83
    %p85 = scmp.eq.s32.totalorder %s17, 0
    %p86 = por %p84, %p85
    %s88 = sadd.s32 %s87, 1
    %p91 = scmp.eq.s32.totalorder %s11, 1
    %p92 = scmp.ne.s32.totalorder %s87, %s89
    %p93 = scmp.eq.s32.totalorder %s11, 0
    %p94 = por %p92, %p93
    %p95 = scmp.ne.s32.totalorder %s87, %s89
    %p96 = scmp.eq.s32.totalorder %s16, 1
    %p97 = por %p95, %p96
    %p98 = scmp.ne.s32.totalorder %s89, %s90
    %p99 = scmp.eq.s32.totalorder %s16, 0
    %p100 = por %p98, %p99
    %p101 = scmp.ne.s32.totalorder %s89, %s90
    %p102 = scmp.eq.s32.totalorder %s17, 1
    %p103 = por %p101, %p102
    %p105 = scmp.ne.s32.totalorder %s90, %s104
    %p106 = scmp.eq.s32.totalorder %s17, 0
    %p107 = por %p105, %p106
    %s109 = sadd.s32 %s108, 1
    %p112 = scmp.eq.s32.totalorder %s11, 1
    %p113 = scmp.ne.s32.totalorder %s108, %s110
    %p114 = scmp.eq.s32.totalorder %s11, 0
    %p115 = por %p113, %p114
    %p116 = scmp.ne.s32.totalorder %s108, %s110
    %p117 = scmp.eq.s32.totalorder %s16, 1
    %p118 = por %p116, %p117
    %p119 = scmp.ne.s32.totalorder %s110, %s111
    %p120 = scmp.eq.s32.totalorder %s16, 0
    %p121 = por %p119, %p120
    %p122 = scmp.ne.s32.totalorder %s110, %s111
    %p123 = scmp.eq.s32.totalorder %s17, 1
    %p124 = por %p122, %p123
    %p126 = scmp.ne.s32.totalorder %s111, %s125
    %p127 = scmp.eq.s32.totalorder %s17, 0
    %p128 = por %p126, %p127
    %s129 = ssub.s32 %s11, %s18
    %p130 = scmp.eq.s32.totalorder %s129, 0
    %s132 = sadd.s32 %s131, 1
    %s133 = scalar_select %p130, %s131, %s132
    %p136 = pneg %p130
    %p137 = scmp.eq.s32.totalorder %s11, 1
    %p138 = por %p136, %p137
    %p139 = scmp.ne.s32.totalorder %s131, %s134
    %p140 = scmp.eq.s32.totalorder %s11, 0
    %p141 = por %p139, %p140
    %p142 = scmp.ne.s32.totalorder %s131, %s134
    %p143 = scmp.eq.s32.totalorder %s16, 1
    %p144 = por %p142, %p143
    %p145 = scmp.ne.s32.totalorder %s134, %s135
    %p146 = scmp.eq.s32.totalorder %s16, 0
    %p147 = por %p145, %p146
    %p148 = scmp.ne.s32.totalorder %s134, %s135
    %p149 = scmp.eq.s32.totalorder %s17, 1
    %p150 = por %p148, %p149
    %p152 = scmp.ne.s32.totalorder %s135, %s151
    %p153 = scmp.eq.s32.totalorder %s17, 0
    %p154 = por %p152, %p153
    %p155 = scmp.le.s32.totalorder 1, %s11
    %p156 = scmp.lt.s32.totalorder %s11, 3
    %p157 = pnand %p155, %p156
    %p158 = pneg %p157
    // Predicated region
    $region9: #{tpu_custom_call.1} parent=5 // pred_check
      _
    $region10: #{tpu_custom_call.1} parent=5 // pred_check_branch
      %160 = sbr.rel (%p157) target = $region12
    $region11: #{tpu_custom_call.1} parent=5 // pred_region
      %s161 = ssub.s32 %s11, 1
      // Predicated region
      $region13: #{tpu_custom_call.1} parent=11 // pred_check
        %p162 = pneg %p58
      $region14: #{tpu_custom_call.1} parent=11 // pred_check_branch
        %164 = sbr.rel (%p162) target = $region16
      $region15: #{tpu_custom_call.1} parent=11 // pred_region
        _
      $region16: #{tpu_custom_call.1} parent=11 // pred_fallthru
        _
      // Predicated region
      $region17: #{tpu_custom_call.1} parent=11 // pred_check
        %p165 = pneg %p79
      $region18: #{tpu_custom_call.1} parent=11 // pred_check_branch
        %167 = sbr.rel (%p165) target = $region20
      $region19: #{tpu_custom_call.1} parent=11 // pred_region
        _
      $region20: #{tpu_custom_call.1} parent=11 // pred_fallthru
        _
      // Predicated region
      $region21: #{tpu_custom_call.1} parent=11 // pred_check
        %p168 = pneg %p100
      $region22: #{tpu_custom_call.1} parent=11 // pred_check_branch
        %170 = sbr.rel (%p168) target = $region24
      $region23: #{tpu_custom_call.1} parent=11 // pred_region
        _
      $region24: #{tpu_custom_call.1} parent=11 // pred_fallthru
        _
      // Predicated region
      $region25: #{tpu_custom_call.1} parent=11 // pred_check
        %p171 = pneg %p121
      $region26: #{tpu_custom_call.1} parent=11 // pred_check_branch
        %173 = sbr.rel (%p171) target = $region28
      $region27: #{tpu_custom_call.1} parent=11 // pred_region
        _
      $region28: #{tpu_custom_call.1} parent=11 // pred_fallthru
        _
    $region12: #{tpu_custom_call.1} parent=5 // pred_fallthru
      _
    %p174 = scmp.lt.s32.totalorder %s11, 2
    // Predicated region
    $region29: #{tpu_custom_call.1} parent=5 // pred_check
      %p175 = pneg %p174
    $region30: #{tpu_custom_call.1} parent=5 // pred_check_branch
      %177 = sbr.rel (%p175) target = $region32
    $region31: #{tpu_custom_call.1} parent=5 // pred_region
      // Predicated region
      $region33: #{tpu_custom_call.1} parent=31 // pred_check
        %p178 = pneg %p31
      $region34: #{tpu_custom_call.1} parent=31 // pred_check_branch
        %180 = sbr.rel (%p178) target = $region36
      $region35: #{tpu_custom_call.1} parent=31 // pred_region
        %p181 = scmp.lt.s32.totalorder %s11, 1
        %s182 = scalar_select %p181, %s11, 1
        %s183 = smul.addr %s182, 32
        %s184 = smul.addr %s183, 8
        %s185 = scalar_lea.vmem %s0, %s184
      $region36: #{tpu_custom_call.1} parent=31 // pred_fallthru
        _
    $region32: #{tpu_custom_call.1} parent=5 // pred_fallthru
      _
    %p186 = scmp.le.s32.totalorder 1, %s11
    %p187 = scmp.lt.s32.totalorder %s11, 3
    %p188 = pnand %p186, %p187
    %p189 = pneg %p188
    // Predicated region
    $region37: #{tpu_custom_call.1} parent=5 // pred_check
      _
    $region38: #{tpu_custom_call.1} parent=5 // pred_check_branch
      %191 = sbr.rel (%p188) target = $region40
    $region39: #{tpu_custom_call.1} parent=5 // pred_region
      %s192 = ssub.s32 %s11, 1
      %p193 = scmp.lt.s32.totalorder %s16, 1
      %s194 = scalar_select %p193, %s16, 1
      %s195 = smul.addr %s194, 32
      %s196 = smul.addr %s195, 8
      %s197 = scalar_lea.vmem %s0, %s196
      %p198 = pneg %p37
      %p199 = pneg %p34
      %p200 = pneg %p58
      %p201 = pneg %p55
      %p202 = pneg %p79
      %p203 = pneg %p76
      %p204 = pneg %p100
      %p205 = pneg %p97
      %p206 = pneg %p121
      %p207 = pneg %p118
      %p208 = pneg %p147
      %p209 = pneg %p144
      %p210 = scmp.lt.s32.totalorder %s16, 1
      %s211 = scalar_select %p210, %s16, 1
      %s212 = smul.addr %s211, 32
      %s213 = smul.addr %s212, 8
      %s214 = scalar_lea.vmem %s5, %s213
      %p215 = scmp.lt.s32.totalorder %s16, 1
      %s216 = scalar_select %p215, %s16, 1
      %s217 = smul.addr %s216, 32
      %s218 = smul.addr %s217, 8
      %s219 = scalar_lea.vmem %s0, %s218
      %p220 = scmp.lt.s32.totalorder %s16, 1
      %s221 = scalar_select %p220, %s16, 1
      %s222 = smul.addr %s221, 32
      %s223 = smul.addr %s222, 8
      %s224 = scalar_lea.vmem %s5, %s223
      %v226 = vld [vmem:[%s219] sm:$0xff]
      %v227 = vld [vmem:[%s219 + $0x8] sm:$0xff]
      %v228 = vld [vmem:[%s219 + $0x10] sm:$0xff]
      %v229 = vld [vmem:[%s219 + $0x18] sm:$0xff]
      %v230 = vld [vmem:[%s219 + $0x20] sm:$0xff]
      %v231 = vld [vmem:[%s219 + $0x28] sm:$0xff]
      %v232 = vld [vmem:[%s219 + $0x30] sm:$0xff]
      %v233 = vld [vmem:[%s219 + $0x38] sm:$0xff]
      %v234 = vld [vmem:[%s219 + $0x40] sm:$0xff]
      %v235 = vld [vmem:[%s219 + $0x48] sm:$0xff]
      %v236 = vld [vmem:[%s219 + $0x50] sm:$0xff]
      %v237 = vld [vmem:[%s219 + $0x58] sm:$0xff]
      %v238 = vld [vmem:[%s219 + $0x60] sm:$0xff]
      %v239 = vld [vmem:[%s219 + $0x68] sm:$0xff]
      %v240 = vld [vmem:[%s219 + $0x70] sm:$0xff]
      %v241 = vld [vmem:[%s219 + $0x78] sm:$0xff]
      %v242 = vld [vmem:[%s219 + $0x80] sm:$0xff]
      %v243 = vld [vmem:[%s219 + $0x88] sm:$0xff]
      %v244 = vld [vmem:[%s219 + $0x90] sm:$0xff]
      %v245 = vld [vmem:[%s219 + $0x98] sm:$0xff]
      %v246 = vld [vmem:[%s219 + $0xa0] sm:$0xff]
      %v247 = vld [vmem:[%s219 + $0xa8] sm:$0xff]
      %v248 = vld [vmem:[%s219 + $0xb0] sm:$0xff]
      %v249 = vld [vmem:[%s219 + $0xb8] sm:$0xff]
      %v250 = vld [vmem:[%s219 + $0xc0] sm:$0xff]
      %v251 = vld [vmem:[%s219 + $0xc8] sm:$0xff]
      %v252 = vld [vmem:[%s219 + $0xd0] sm:$0xff]
      %v253 = vld [vmem:[%s219 + $0xd8] sm:$0xff]
      %v254 = vld [vmem:[%s219 + $0xe0] sm:$0xff]
      %v255 = vld [vmem:[%s219 + $0xe8] sm:$0xff]
      %v256 = vld [vmem:[%s219 + $0xf0] sm:$0xff]
      %v257 = vld [vmem:[%s219 + $0xf8] sm:$0xff]
      %v258 = vld [vmem:[%s3] sm:$0x1]
      %v259 = vld [vmem:[%s4] sm:$0x1]
      %v276 = vrot.slane %v228, 1
      %v277 = vrot.slane %v226, 1
      %v278 = vrot.slane %v230, 1
      %v279 = vrot.slane %v232, 1
      %v280 = vrot.slane %v234, 1
      %v281 = vrot.slane %v236, 1
      %v282 = vrot.slane %v238, 1
      %v283 = vrot.slane %v240, 1
      %v284 = vrot.slane %v242, 1
      %v285 = vrot.slane %v244, 1
      %v286 = vrot.slane %v246, 1
      %v287 = vrot.slane %v248, 1
      %v288 = vrot.slane %v250, 1
      %v289 = vrot.slane %v252, 1
      %v290 = vrot.slane %v254, 1
      %v291 = vrot.slane %v256, 1
      %vm324 = vcmask 1040384
      %v325 = vrot.slane %v228, 7
      %v326 = vrot.slane %v229, 7
      %v327 = vsel %vm324, %v325, %v326
      %v328 = vrot.slane %v226, 7
      %v329 = vrot.slane %v227, 7
      %v330 = vsel %vm324, %v328, %v329
      %v331 = vrot.slane %v230, 7
      %v332 = vrot.slane %v231, 7
      %v333 = vsel %vm324, %v331, %v332
      %v334 = vrot.slane %v232, 7
      %v335 = vrot.slane %v233, 7
      %v336 = vsel %vm324, %v334, %v335
      %v337 = vrot.slane %v234, 7
      %v338 = vrot.slane %v235, 7
      %v339 = vsel %vm324, %v337, %v338
      %v340 = vrot.slane %v236, 7
      %v341 = vrot.slane %v237, 7
      %v342 = vsel %vm324, %v340, %v341
      %v343 = vrot.slane %v238, 7
      %v344 = vrot.slane %v239, 7
      %v345 = vsel %vm324, %v343, %v344
      %v346 = vrot.slane %v240, 7
      %v347 = vrot.slane %v241, 7
      %v348 = vsel %vm324, %v346, %v347
      %v349 = vrot.slane %v242, 7
      %v350 = vrot.slane %v243, 7
      %v351 = vsel %vm324, %v349, %v350
      %v352 = vrot.slane %v244, 7
      %v353 = vrot.slane %v245, 7
      %v354 = vsel %vm324, %v352, %v353
      %v355 = vrot.slane %v246, 7
      %v356 = vrot.slane %v247, 7
      %v357 = vsel %vm324, %v355, %v356
      %v358 = vrot.slane %v248, 7
      %v359 = vrot.slane %v249, 7
      %v360 = vsel %vm324, %v358, %v359
      %v361 = vrot.slane %v250, 7
      %v362 = vrot.slane %v251, 7
      %v363 = vsel %vm324, %v361, %v362
      %v364 = vrot.slane %v252, 7
      %v365 = vrot.slane %v253, 7
      %v366 = vsel %vm324, %v364, %v365
      %v367 = vrot.slane %v254, 7
      %v368 = vrot.slane %v255, 7
      %v369 = vsel %vm324, %v367, %v368
      %v370 = vrot.slane %v256, 7
      %v371 = vrot.slane %v257, 7
      %v372 = vsel %vm324, %v370, %v371
      %v421 = vrot.slane %v229, 5
      %v422 = vrot.slane %v227, 5
      %v423 = vrot.slane %v231, 5
      %v424 = vrot.slane %v233, 5
      %v425 = vrot.slane %v235, 5
      %v426 = vrot.slane %v237, 5
      %v427 = vrot.slane %v239, 5
      %v428 = vrot.slane %v241, 5
      %v429 = vrot.slane %v243, 5
      %v430 = vrot.slane %v245, 5
      %v431 = vrot.slane %v247, 5
      %v432 = vrot.slane %v249, 5
      %v433 = vrot.slane %v251, 5
      %v434 = vrot.slane %v253, 5
      %v435 = vrot.slane %v255, 5
      %v436 = vrot.slane %v257, 5
      %v453 = vsel %vm324, %v276, %v325
      %v454 = vsel %vm324, %v277, %v328
      %v455 = vsel %vm324, %v278, %v331
      %v456 = vsel %vm324, %v279, %v334
      %v457 = vsel %vm324, %v280, %v337
      %v458 = vsel %vm324, %v281, %v340
      %v459 = vsel %vm324, %v282, %v343
      %v460 = vsel %vm324, %v283, %v346
      %v461 = vsel %vm324, %v284, %v349
      %v462 = vsel %vm324, %v285, %v352
      %v463 = vsel %vm324, %v286, %v355
      %v464 = vsel %vm324, %v287, %v358
      %v465 = vsel %vm324, %v288, %v361
      %v466 = vsel %vm324, %v289, %v364
      %v467 = vsel %vm324, %v290, %v367
      %v468 = vsel %vm324, %v291, %v370
      %v469 = vsel %vm324, %v326, %v421
      %v470 = vsel %vm324, %v329, %v422
      %v471 = vsel %vm324, %v332, %v423
      %v472 = vsel %vm324, %v335, %v424
      %v473 = vsel %vm324, %v338, %v425
      %v474 = vsel %vm324, %v341, %v426
      %v475 = vsel %vm324, %v344, %v427
      %v476 = vsel %vm324, %v347, %v428
      %v477 = vsel %vm324, %v350, %v429
      %v478 = vsel %vm324, %v353, %v430
      %v479 = vsel %vm324, %v356, %v431
      %v480 = vsel %vm324, %v359, %v432
      %v481 = vsel %vm324, %v362, %v433
      %v482 = vsel %vm324, %v365, %v434
      %v483 = vsel %vm324, %v368, %v435
      %v484 = vsel %vm324, %v371, %v436
      %vm517 = vcmask 1046528
      %v518 = vrot.slane %v453, 1
      %v519 = vrot.slane %v327, 1
      %v520 = vsel %vm517, %v518, %v519
      %v521 = vrot.slane %v469, 1
      %v522 = vsel %vm517, %v519, %v521
      %v523 = vrot.slane %v454, 1
      %v524 = vrot.slane %v330, 1
      %v525 = vsel %vm517, %v523, %v524
      %v526 = vrot.slane %v470, 1
      %v527 = vsel %vm517, %v524, %v526
      %v528 = vrot.slane %v455, 1
      %v529 = vrot.slane %v333, 1
      %v530 = vsel %vm517, %v528, %v529
      %v531 = vrot.slane %v471, 1
      %v532 = vsel %vm517, %v529, %v531
      %v533 = vrot.slane %v456, 1
      %v534 = vrot.slane %v336, 1
      %v535 = vsel %vm517, %v533, %v534
      %v536 = vrot.slane %v472, 1
      %v537 = vsel %vm517, %v534, %v536
      %v538 = vrot.slane %v457, 1
      %v539 = vrot.slane %v339, 1
      %v540 = vsel %vm517, %v538, %v539
      %v541 = vrot.slane %v473, 1
      %v542 = vsel %vm517, %v539, %v541
      %v543 = vrot.slane %v458, 1
      %v544 = vrot.slane %v342, 1
      %v545 = vsel %vm517, %v543, %v544
      %v546 = vrot.slane %v474, 1
      %v547 = vsel %vm517, %v544, %v546
      %v548 = vrot.slane %v459, 1
      %v549 = vrot.slane %v345, 1
      %v550 = vsel %vm517, %v548, %v549
      %v551 = vrot.slane %v475, 1
      %v552 = vsel %vm517, %v549, %v551
      %v553 = vrot.slane %v460, 1
      %v554 = vrot.slane %v348, 1
      %v555 = vsel %vm517, %v553, %v554
      %v556 = vrot.slane %v476, 1
      %v557 = vsel %vm517, %v554, %v556
      %v558 = vrot.slane %v461, 1
      %v559 = vrot.slane %v351, 1
      %v560 = vsel %vm517, %v558, %v559
      %v561 = vrot.slane %v477, 1
      %v562 = vsel %vm517, %v559, %v561
      %v563 = vrot.slane %v462, 1
      %v564 = vrot.slane %v354, 1
      %v565 = vsel %vm517, %v563, %v564
      %v566 = vrot.slane %v478, 1
      %v567 = vsel %vm517, %v564, %v566
      %v568 = vrot.slane %v463, 1
      %v569 = vrot.slane %v357, 1
      %v570 = vsel %vm517, %v568, %v569
      %v571 = vrot.slane %v479, 1
      %v572 = vsel %vm517, %v569, %v571
      %v573 = vrot.slane %v464, 1
      %v574 = vrot.slane %v360, 1
      %v575 = vsel %vm517, %v573, %v574
      %v576 = vrot.slane %v480, 1
      %v577 = vsel %vm517, %v574, %v576
      %v578 = vrot.slane %v465, 1
      %v579 = vrot.slane %v363, 1
      %v580 = vsel %vm517, %v578, %v579
      %v581 = vrot.slane %v481, 1
      %v582 = vsel %vm517, %v579, %v581
      %v583 = vrot.slane %v466, 1
      %v584 = vrot.slane %v366, 1
      %v585 = vsel %vm517, %v583, %v584
      %v586 = vrot.slane %v482, 1
      %v587 = vsel %vm517, %v584, %v586
      %v588 = vrot.slane %v467, 1
      %v589 = vrot.slane %v369, 1
      %v590 = vsel %vm517, %v588, %v589
      %v591 = vrot.slane %v483, 1
      %v592 = vsel %vm517, %v589, %v591
      %v593 = vrot.slane %v468, 1
      %v594 = vrot.slane %v372, 1
      %v595 = vsel %vm517, %v593, %v594
      %v596 = vrot.slane %v484, 1
      %v597 = vsel %vm517, %v594, %v596
      %598 = vrot.lane.b32.xlu0 %v520, 4
      %v599 = vpop.permute.xlu0 %598
      %600 = vrot.lane.b32.xlu0 %v522, 4
      %v601 = vpop.permute.xlu0 %600
      %602 = vrot.lane.b32.xlu0 %v525, 4
      %v603 = vpop.permute.xlu0 %602
      %604 = vrot.lane.b32.xlu0 %v527, 4
      %v605 = vpop.permute.xlu0 %604
      %606 = vrot.lane.b32.xlu0 %v530, 4
      %v607 = vpop.permute.xlu0 %606
      %608 = vrot.lane.b32.xlu0 %v532, 4
      %v609 = vpop.permute.xlu0 %608
      %610 = vrot.lane.b32.xlu0 %v535, 4
      %v611 = vpop.permute.xlu0 %610
      %612 = vrot.lane.b32.xlu0 %v537, 4
      %v613 = vpop.permute.xlu0 %612
      %614 = vrot.lane.b32.xlu0 %v540, 4
      %v615 = vpop.permute.xlu0 %614
      %616 = vrot.lane.b32.xlu0 %v542, 4
      %v617 = vpop.permute.xlu0 %616
      %618 = vrot.lane.b32.xlu0 %v545, 4
      %v619 = vpop.permute.xlu0 %618
      %620 = vrot.lane.b32.xlu0 %v547, 4
      %v621 = vpop.permute.xlu0 %620
      %622 = vrot.lane.b32.xlu0 %v550, 4
      %v623 = vpop.permute.xlu0 %622
      %624 = vrot.lane.b32.xlu0 %v552, 4
      %v625 = vpop.permute.xlu0 %624
      %626 = vrot.lane.b32.xlu0 %v555, 4
      %v627 = vpop.permute.xlu0 %626
      %628 = vrot.lane.b32.xlu0 %v557, 4
      %v629 = vpop.permute.xlu0 %628
      %630 = vrot.lane.b32.xlu0 %v560, 4
      %v631 = vpop.permute.xlu0 %630
      %632 = vrot.lane.b32.xlu0 %v562, 4
      %v633 = vpop.permute.xlu0 %632
      %634 = vrot.lane.b32.xlu0 %v565, 4
      %v635 = vpop.permute.xlu0 %634
      %636 = vrot.lane.b32.xlu0 %v567, 4
      %v637 = vpop.permute.xlu0 %636
      %638 = vrot.lane.b32.xlu0 %v570, 4
      %v639 = vpop.permute.xlu0 %638
      %640 = vrot.lane.b32.xlu0 %v572, 4
      %v641 = vpop.permute.xlu0 %640
      %642 = vrot.lane.b32.xlu0 %v575, 4
      %v643 = vpop.permute.xlu0 %642
      %644 = vrot.lane.b32.xlu0 %v577, 4
      %v645 = vpop.permute.xlu0 %644
      %646 = vrot.lane.b32.xlu0 %v580, 4
      %v647 = vpop.permute.xlu0 %646
      %648 = vrot.lane.b32.xlu0 %v582, 4
      %v649 = vpop.permute.xlu0 %648
      %650 = vrot.lane.b32.xlu0 %v585, 4
      %v651 = vpop.permute.xlu0 %650
      %652 = vrot.lane.b32.xlu0 %v587, 4
      %v653 = vpop.permute.xlu0 %652
      %654 = vrot.lane.b32.xlu0 %v590, 4
      %v655 = vpop.permute.xlu0 %654
      %656 = vrot.lane.b32.xlu0 %v592, 4
      %v657 = vpop.permute.xlu0 %656
      %658 = vrot.lane.b32.xlu0 %v595, 4
      %v659 = vpop.permute.xlu0 %658
      %660 = vrot.lane.b32.xlu0 %v597, 4
      %v661 = vpop.permute.xlu0 %660
      %vm694 = vcmask 1045504
      %v695 = vrot.slane %v453, 2
      %v696 = vrot.slane %v327, 2
      %v697 = vsel %vm694, %v695, %v696
      %v698 = vrot.slane %v469, 2
      %v699 = vsel %vm694, %v696, %v698
      %v700 = vrot.slane %v454, 2
      %v701 = vrot.slane %v330, 2
      %v702 = vsel %vm694, %v700, %v701
      %v703 = vrot.slane %v470, 2
      %v704 = vsel %vm694, %v701, %v703
      %v705 = vrot.slane %v455, 2
      %v706 = vrot.slane %v333, 2
      %v707 = vsel %vm694, %v705, %v706
      %v708 = vrot.slane %v471, 2
      %v709 = vsel %vm694, %v706, %v708
      %v710 = vrot.slane %v456, 2
      %v711 = vrot.slane %v336, 2
      %v712 = vsel %vm694, %v710, %v711
      %v713 = vrot.slane %v472, 2
      %v714 = vsel %vm694, %v711, %v713
      %v715 = vrot.slane %v457, 2
      %v716 = vrot.slane %v339, 2
      %v717 = vsel %vm694, %v715, %v716
      %v718 = vrot.slane %v473, 2
      %v719 = vsel %vm694, %v716, %v718
      %v720 = vrot.slane %v458, 2
      %v721 = vrot.slane %v342, 2
      %v722 = vsel %vm694, %v720, %v721
      %v723 = vrot.slane %v474, 2
      %v724 = vsel %vm694, %v721, %v723
      %v725 = vrot.slane %v459, 2
      %v726 = vrot.slane %v345, 2
      %v727 = vsel %vm694, %v725, %v726
      %v728 = vrot.slane %v475, 2
      %v729 = vsel %vm694, %v726, %v728
      %v730 = vrot.slane %v460, 2
      %v731 = vrot.slane %v348, 2
      %v732 = vsel %vm694, %v730, %v731
      %v733 = vrot.slane %v476, 2
      %v734 = vsel %vm694, %v731, %v733
      %v735 = vrot.slane %v461, 2
      %v736 = vrot.slane %v351, 2
      %v737 = vsel %vm694, %v735, %v736
      %v738 = vrot.slane %v477, 2
      %v739 = vsel %vm694, %v736, %v738
      %v740 = vrot.slane %v462, 2
      %v741 = vrot.slane %v354, 2
      %v742 = vsel %vm694, %v740, %v741
      %v743 = vrot.slane %v478, 2
      %v744 = vsel %vm694, %v741, %v743
      %v745 = vrot.slane %v463, 2
      %v746 = vrot.slane %v357, 2
      %v747 = vsel %vm694, %v745, %v746
      %v748 = vrot.slane %v479, 2
      %v749 = vsel %vm694, %v746, %v748
      %v750 = vrot.slane %v464, 2
      %v751 = vrot.slane %v360, 2
      %v752 = vsel %vm694, %v750, %v751
      %v753 = vrot.slane %v480, 2
      %v754 = vsel %vm694, %v751, %v753
      %v755 = vrot.slane %v465, 2
      %v756 = vrot.slane %v363, 2
      %v757 = vsel %vm694, %v755, %v756
      %v758 = vrot.slane %v481, 2
      %v759 = vsel %vm694, %v756, %v758
      %v760 = vrot.slane %v466, 2
      %v761 = vrot.slane %v366, 2
      %v762 = vsel %vm694, %v760, %v761
      %v763 = vrot.slane %v482, 2
      %v764 = vsel %vm694, %v761, %v763
      %v765 = vrot.slane %v467, 2
      %v766 = vrot.slane %v369, 2
      %v767 = vsel %vm694, %v765, %v766
      %v768 = vrot.slane %v483, 2
      %v769 = vsel %vm694, %v766, %v768
      %v770 = vrot.slane %v468, 2
      %v771 = vrot.slane %v372, 2
      %v772 = vsel %vm694, %v770, %v771
      %v773 = vrot.slane %v484, 2
      %v774 = vsel %vm694, %v771, %v773
      %775 = vrot.lane.b32.xlu0 %v697, 8
      %v776 = vpop.permute.xlu0 %775
      %777 = vrot.lane.b32.xlu0 %v699, 8
      %v778 = vpop.permute.xlu0 %777
      %779 = vrot.lane.b32.xlu0 %v702, 8
      %v780 = vpop.permute.xlu0 %779
      %781 = vrot.lane.b32.xlu0 %v704, 8
      %v782 = vpop.permute.xlu0 %781
      %783 = vrot.lane.b32.xlu0 %v707, 8
      %v784 = vpop.permute.xlu0 %783
      %785 = vrot.lane.b32.xlu0 %v709, 8
      %v786 = vpop.permute.xlu0 %785
      %787 = vrot.lane.b32.xlu0 %v712, 8
      %v788 = vpop.permute.xlu0 %787
      %789 = vrot.lane.b32.xlu0 %v714, 8
      %v790 = vpop.permute.xlu0 %789
      %791 = vrot.lane.b32.xlu0 %v717, 8
      %v792 = vpop.permute.xlu0 %791
      %793 = vrot.lane.b32.xlu0 %v719, 8
      %v794 = vpop.permute.xlu0 %793
      %795 = vrot.lane.b32.xlu0 %v722, 8
      %v796 = vpop.permute.xlu0 %795
      %797 = vrot.lane.b32.xlu0 %v724, 8
      %v798 = vpop.permute.xlu0 %797
      %799 = vrot.lane.b32.xlu0 %v727, 8
      %v800 = vpop.permute.xlu0 %799
      %801 = vrot.lane.b32.xlu0 %v729, 8
      %v802 = vpop.permute.xlu0 %801
      %803 = vrot.lane.b32.xlu0 %v732, 8
      %v804 = vpop.permute.xlu0 %803
      %805 = vrot.lane.b32.xlu0 %v734, 8
      %v806 = vpop.permute.xlu0 %805
      %807 = vrot.lane.b32.xlu0 %v737, 8
      %v808 = vpop.permute.xlu0 %807
      %809 = vrot.lane.b32.xlu0 %v739, 8
      %v810 = vpop.permute.xlu0 %809
      %811 = vrot.lane.b32.xlu0 %v742, 8
      %v812 = vpop.permute.xlu0 %811
      %813 = vrot.lane.b32.xlu0 %v744, 8
      %v814 = vpop.permute.xlu0 %813
      %815 = vrot.lane.b32.xlu0 %v747, 8
      %v816 = vpop.permute.xlu0 %815
      %817 = vrot.lane.b32.xlu0 %v749, 8
      %v818 = vpop.permute.xlu0 %817
      %819 = vrot.lane.b32.xlu0 %v752, 8
      %v820 = vpop.permute.xlu0 %819
      %821 = vrot.lane.b32.xlu0 %v754, 8
      %v822 = vpop.permute.xlu0 %821
      %823 = vrot.lane.b32.xlu0 %v757, 8
      %v824 = vpop.permute.xlu0 %823
      %825 = vrot.lane.b32.xlu0 %v759, 8
      %v826 = vpop.permute.xlu0 %825
      %827 = vrot.lane.b32.xlu0 %v762, 8
      %v828 = vpop.permute.xlu0 %827
      %829 = vrot.lane.b32.xlu0 %v764, 8
      %v830 = vpop.permute.xlu0 %829
      %831 = vrot.lane.b32.xlu0 %v767, 8
      %v832 = vpop.permute.xlu0 %831
      %833 = vrot.lane.b32.xlu0 %v769, 8
      %v834 = vpop.permute.xlu0 %833
      %835 = vrot.lane.b32.xlu0 %v772, 8
      %v836 = vpop.permute.xlu0 %835
      %837 = vrot.lane.b32.xlu0 %v774, 8
      %v838 = vpop.permute.xlu0 %837
      %vm871 = vcmask 31744
      %v872 = vsel %vm871, %v453, %v599
      %v873 = vsel %vm871, %v327, %v601
      %v874 = vsel %vm871, %v454, %v603
      %v875 = vsel %vm871, %v330, %v605
      %v876 = vsel %vm871, %v455, %v607
      %v877 = vsel %vm871, %v333, %v609
      %v878 = vsel %vm871, %v456, %v611
      %v879 = vsel %vm871, %v336, %v613
      %v880 = vsel %vm871, %v457, %v615
      %v881 = vsel %vm871, %v339, %v617
      %v882 = vsel %vm871, %v458, %v619
      %v883 = vsel %vm871, %v342, %v621
      %v884 = vsel %vm871, %v459, %v623
      %v885 = vsel %vm871, %v345, %v625
      %v886 = vsel %vm871, %v460, %v627
      %v887 = vsel %vm871, %v348, %v629
      %v888 = vsel %vm871, %v461, %v631
      %v889 = vsel %vm871, %v351, %v633
      %v890 = vsel %vm871, %v462, %v635
      %v891 = vsel %vm871, %v354, %v637
      %v892 = vsel %vm871, %v463, %v639
      %v893 = vsel %vm871, %v357, %v641
      %v894 = vsel %vm871, %v464, %v643
      %v895 = vsel %vm871, %v360, %v645
      %v896 = vsel %vm871, %v465, %v647
      %v897 = vsel %vm871, %v363, %v649
      %v898 = vsel %vm871, %v466, %v651
      %v899 = vsel %vm871, %v366, %v653
      %v900 = vsel %vm871, %v467, %v655
      %v901 = vsel %vm871, %v369, %v657
      %v902 = vsel %vm871, %v468, %v659
      %v903 = vsel %vm871, %v372, %v661
      %vm904 = vcmask 64512
      %v905 = vsel %vm904, %v872, %v776
      %v906 = vsel %vm904, %v873, %v778
      %v907 = vsel %vm904, %v874, %v780
      %v908 = vsel %vm904, %v875, %v782
      %v909 = vsel %vm904, %v876, %v784
      %v910 = vsel %vm904, %v877, %v786
      %v911 = vsel %vm904, %v878, %v788
      %v912 = vsel %vm904, %v879, %v790
      %v913 = vsel %vm904, %v880, %v792
      %v914 = vsel %vm904, %v881, %v794
      %v915 = vsel %vm904, %v882, %v796
      %v916 = vsel %vm904, %v883, %v798
      %v917 = vsel %vm904, %v884, %v800
      %v918 = vsel %vm904, %v885, %v802
      %v919 = vsel %vm904, %v886, %v804
      %v920 = vsel %vm904, %v887, %v806
      %v921 = vsel %vm904, %v888, %v808
      %v922 = vsel %vm904, %v889, %v810
      %v923 = vsel %vm904, %v890, %v812
      %v924 = vsel %vm904, %v891, %v814
      %v925 = vsel %vm904, %v892, %v816
      %v926 = vsel %vm904, %v893, %v818
      %v927 = vsel %vm904, %v894, %v820
      %v928 = vsel %vm904, %v895, %v822
      %v929 = vsel %vm904, %v896, %v824
      %v930 = vsel %vm904, %v897, %v826
      %v931 = vsel %vm904, %v898, %v828
      %v932 = vsel %vm904, %v899, %v830
      %v933 = vsel %vm904, %v900, %v832
      %v934 = vsel %vm904, %v901, %v834
      %v935 = vsel %vm904, %v902, %v836
      %v936 = vsel %vm904, %v903, %v838
      %v937 = vpack.c.bf16 %v906, %v905
      %v938 = vpack.c.bf16 %v908, %v907
      %v939 = vpack.c.bf16 %v910, %v909
      %v940 = vpack.c.bf16 %v912, %v911
      %v941 = vpack.c.bf16 %v914, %v913
      %v942 = vpack.c.bf16 %v916, %v915
      %v943 = vpack.c.bf16 %v918, %v917
      %v944 = vpack.c.bf16 %v920, %v919
      %v945 = vpack.c.bf16 %v922, %v921
      %v946 = vpack.c.bf16 %v924, %v923
      %v947 = vpack.c.bf16 %v926, %v925
      %v948 = vpack.c.bf16 %v928, %v927
      %v949 = vpack.c.bf16 %v930, %v929
      %v950 = vpack.c.bf16 %v932, %v931
      %v951 = vpack.c.bf16 %v934, %v933
      %v952 = vld [vmem:[%s1] sm:$0xf]
      %v953 = vld [vmem:[%s1 + $0x4] sm:$0x3]
      %v954 = vpack.c.bf16 %v936, %v935
      %s955 = scalar_lea.vmem %s1, 8
      %v956 = vld [vmem:[%s955] sm:$0xf]
      %v957 = vld [vmem:[%s955 + $0x4] sm:$0x3]
      %v960 = vunpack.c.l.b16 %v956
      %v961 = vunpack.c.l.b16 %v957
      %v962 = vpack.c.b16 %v961, %v960
      %vm963 = vcmask 97280
      %v965 = vsel %vm963, %v938, 0
      %v968 = vsel %vm963, %v937, 0
      %v971 = vsel %vm963, %v939, 0
      %v974 = vsel %vm963, %v940, 0
      %v977 = vsel %vm963, %v941, 0
      %v980 = vsel %vm963, %v942, 0
      %v983 = vsel %vm963, %v943, 0
      %v986 = vsel %vm963, %v944, 0
      %v989 = vsel %vm963, %v945, 0
      %v992 = vsel %vm963, %v946, 0
      %v995 = vsel %vm963, %v947, 0
      %v998 = vsel %vm963, %v948, 0
      %v1001 = vsel %vm963, %v949, 0
      %v1004 = vsel %vm963, %v950, 0
      %v1007 = vsel %vm963, %v951, 0
      %v1010 = vsel %vm963, %v954, 0
      %v1013 = vsel %vm694, %v962, 0
      %1015 = vmatpush.bf16.msra.mxu0 0
      %1016 = vmatpush.bf16.msra.mxu0 0
      %1017 = vmatpush.bf16.msra.mxu0 0
      %1018 = vmatpush.bf16.msra.mxu0 0
      %1019 = vmatpush.bf16.msra.mxu0 0
      %1020 = vmatpush.bf16.msra.mxu0 0
      %1021 = vmatpush.bf16.msra.mxu0 0
      %1022 = vmatpush.bf16.msra.mxu0 %v1013
      %1023 = vmatmul.bf16.gmra.mxu0 %v965
      %v1024 = vpop.f32.mrf.mxu0
      %v1025 = vadd.f32 0.0, %v1024
      %v1026 = vpop.f32.mrf.mxu0
      %v1027 = vadd.f32 0.0, %v1026
      %1028 = vmatmul.bf16.gmra.mxu0 %v968
      %v1029 = vpop.f32.mrf.mxu0
      %v1030 = vadd.f32 0.0, %v1029
      %v1031 = vpop.f32.mrf.mxu0
      %v1032 = vadd.f32 0.0, %v1031
      %1033 = vmatmul.bf16.gmra.mxu0 %v971
      %v1034 = vpop.f32.mrf.mxu0
      %v1035 = vadd.f32 0.0, %v1034
      %v1036 = vpop.f32.mrf.mxu0
      %v1037 = vadd.f32 0.0, %v1036
      %1038 = vmatmul.bf16.gmra.mxu0 %v974
      %v1039 = vpop.f32.mrf.mxu0
      %v1040 = vadd.f32 0.0, %v1039
      %v1041 = vpop.f32.mrf.mxu0
      %v1042 = vadd.f32 0.0, %v1041
      %1043 = vmatmul.bf16.gmra.mxu0 %v977
      %v1044 = vpop.f32.mrf.mxu0
      %v1045 = vadd.f32 0.0, %v1044
      %v1046 = vpop.f32.mrf.mxu0
      %v1047 = vadd.f32 0.0, %v1046
      %1048 = vmatmul.bf16.gmra.mxu0 %v980
      %v1049 = vpop.f32.mrf.mxu0
      %v1050 = vadd.f32 0.0, %v1049
      %v1051 = vpop.f32.mrf.mxu0
      %v1052 = vadd.f32 0.0, %v1051
      %1053 = vmatmul.bf16.gmra.mxu0 %v983
      %v1054 = vpop.f32.mrf.mxu0
      %v1055 = vadd.f32 0.0, %v1054
      %v1056 = vpop.f32.mrf.mxu0
      %v1057 = vadd.f32 0.0, %v1056
      %1058 = vmatmul.bf16.gmra.mxu0 %v986
      %v1059 = vpop.f32.mrf.mxu0
      %v1060 = vadd.f32 0.0, %v1059
      %v1061 = vpop.f32.mrf.mxu0
      %v1062 = vadd.f32 0.0, %v1061
      %1063 = vmatmul.bf16.gmra.mxu0 %v989
      %v1064 = vpop.f32.mrf.mxu0
      %v1065 = vadd.f32 0.0, %v1064
      %v1066 = vpop.f32.mrf.mxu0
      %v1067 = vadd.f32 0.0, %v1066
      %1068 = vmatmul.bf16.gmra.mxu0 %v992
      %v1069 = vpop.f32.mrf.mxu0
      %v1070 = vadd.f32 0.0, %v1069
      %v1071 = vpop.f32.mrf.mxu0
      %v1072 = vadd.f32 0.0, %v1071
      %1073 = vmatmul.bf16.gmra.mxu0 %v995
      %v1074 = vpop.f32.mrf.mxu0
      %v1075 = vadd.f32 0.0, %v1074
      %v1076 = vpop.f32.mrf.mxu0
      %v1077 = vadd.f32 0.0, %v1076
      %1078 = vmatmul.bf16.gmra.mxu0 %v998
      %v1079 = vpop.f32.mrf.mxu0
      %v1080 = vadd.f32 0.0, %v1079
      %v1081 = vpop.f32.mrf.mxu0
      %v1082 = vadd.f32 0.0, %v1081
      %1083 = vmatmul.bf16.gmra.mxu0 %v1001
      %v1084 = vpop.f32.mrf.mxu0
      %v1085 = vadd.f32 0.0, %v1084
      %v1086 = vpop.f32.mrf.mxu0
      %v1087 = vadd.f32 0.0, %v1086
      %1088 = vmatmul.bf16.gmra.mxu0 %v1004
      %v1089 = vpop.f32.mrf.mxu0
      %v1090 = vadd.f32 0.0, %v1089
      %v1091 = vpop.f32.mrf.mxu0
      %v1092 = vadd.f32 0.0, %v1091
      %1093 = vmatmul.bf16.gmra.mxu0 %v1007
      %v1094 = vpop.f32.mrf.mxu0
      %v1095 = vadd.f32 0.0, %v1094
      %v1096 = vpop.f32.mrf.mxu0
      %v1097 = vadd.f32 0.0, %v1096
      %1098 = vmatmul.bf16.gmra.mxu0 %v1010
      %v1099 = vpop.f32.mrf.mxu0
      %v1100 = vadd.f32 0.0, %v1099
      %v1101 = vpop.f32.mrf.mxu0
      %v1102 = vadd.f32 0.0, %v1101
      %1103 = vdwg.mxu0
      %v1106 = vunpack.c.l.b16 %v952
      %v1107 = vunpack.c.l.b16 %v953
      %v1108 = vpack.c.b16 %v1107, %v1106
      %v1110 = vsel %vm694, %v1108, 0
      %1112 = vmatpush.bf16.msra.mxu0 0
      %1113 = vmatpush.bf16.msra.mxu0 0
      %1114 = vmatpush.bf16.msra.mxu0 0
      %1115 = vmatpush.bf16.msra.mxu0 0
      %1116 = vmatpush.bf16.msra.mxu0 0
      %1117 = vmatpush.bf16.msra.mxu0 0
      %1118 = vmatpush.bf16.msra.mxu0 0
      %1119 = vmatpush.bf16.msra.mxu0 %v1110
      %1120 = vmatmul.bf16.gmra.mxu0 %v968
      %v1121 = vpop.f32.mrf.mxu0
      %v1122 = vadd.f32 %v1025, %v1121
      %v1123 = vpop.f32.mrf.mxu0
      %v1124 = vadd.f32 %v1027, %v1123
      %1125 = vmatmul.bf16.gmra.mxu0 %v965
      %v1126 = vpop.f32.mrf.mxu0
      %v1127 = vadd.f32 %v1030, %v1126
      %v1128 = vpop.f32.mrf.mxu0
      %v1129 = vadd.f32 %v1032, %v1128
      %1130 = vmatmul.bf16.gmra.mxu0 %v968
      %v1131 = vpop.f32.mrf.mxu0
      %v1132 = vadd.f32 %v1035, %v1131
      %v1133 = vpop.f32.mrf.mxu0
      %v1134 = vadd.f32 %v1037, %v1133
      %1135 = vmatmul.bf16.gmra.mxu0 %v971
      %v1136 = vpop.f32.mrf.mxu0
      %v1137 = vadd.f32 %v1040, %v1136
      %v1138 = vpop.f32.mrf.mxu0
      %v1139 = vadd.f32 %v1042, %v1138
      %1140 = vmatmul.bf16.gmra.mxu0 %v974
      %v1141 = vpop.f32.mrf.mxu0
      %v1142 = vadd.f32 %v1045, %v1141
      %v1143 = vpop.f32.mrf.mxu0
      %v1144 = vadd.f32 %v1047, %v1143
      %1145 = vmatmul.bf16.gmra.mxu0 %v977
      %v1146 = vpop.f32.mrf.mxu0
      %v1147 = vadd.f32 %v1050, %v1146
      %v1148 = vpop.f32.mrf.mxu0
      %v1149 = vadd.f32 %v1052, %v1148
      %1150 = vmatmul.bf16.gmra.mxu0 %v980
      %v1151 = vpop.f32.mrf.mxu0
      %v1152 = vadd.f32 %v1055, %v1151
      %v1153 = vpop.f32.mrf.mxu0
      %v1154 = vadd.f32 %v1057, %v1153
      %1155 = vmatmul.bf16.gmra.mxu0 %v983
      %v1156 = vpop.f32.mrf.mxu0
      %v1157 = vadd.f32 %v1060, %v1156
      %v1158 = vpop.f32.mrf.mxu0
      %v1159 = vadd.f32 %v1062, %v1158
      %1160 = vmatmul.bf16.gmra.mxu0 %v986
      %v1161 = vpop.f32.mrf.mxu0
      %v1162 = vadd.f32 %v1065, %v1161
      %v1163 = vpop.f32.mrf.mxu0
      %v1164 = vadd.f32 %v1067, %v1163
      %1165 = vmatmul.bf16.gmra.mxu0 %v989
      %v1166 = vpop.f32.mrf.mxu0
      %v1167 = vadd.f32 %v1070, %v1166
      %v1168 = vpop.f32.mrf.mxu0
      %v1169 = vadd.f32 %v1072, %v1168
      %1170 = vmatmul.bf16.gmra.mxu0 %v992
      %v1171 = vpop.f32.mrf.mxu0
      %v1172 = vadd.f32 %v1075, %v1171
      %v1173 = vpop.f32.mrf.mxu0
      %v1174 = vadd.f32 %v1077, %v1173
      %1175 = vmatmul.bf16.gmra.mxu0 %v995
      %v1176 = vpop.f32.mrf.mxu0
      %v1177 = vadd.f32 %v1080, %v1176
      %v1178 = vpop.f32.mrf.mxu0
      %v1179 = vadd.f32 %v1082, %v1178
      %1180 = vmatmul.bf16.gmra.mxu0 %v998
      %v1181 = vpop.f32.mrf.mxu0
      %v1182 = vadd.f32 %v1085, %v1181
      %v1183 = vpop.f32.mrf.mxu0
      %v1184 = vadd.f32 %v1087, %v1183
      %1185 = vmatmul.bf16.gmra.mxu0 %v1001
      %v1186 = vpop.f32.mrf.mxu0
      %v1187 = vadd.f32 %v1090, %v1186
      %v1188 = vpop.f32.mrf.mxu0
      %v1189 = vadd.f32 %v1092, %v1188
      %1190 = vmatmul.bf16.gmra.mxu0 %v1004
      %v1191 = vpop.f32.mrf.mxu0
      %v1192 = vadd.f32 %v1095, %v1191
      %v1193 = vpop.f32.mrf.mxu0
      %v1194 = vadd.f32 %v1097, %v1193
      %1195 = vmatmul.bf16.gmra.mxu0 %v1007
      %v1196 = vpop.f32.mrf.mxu0
      %v1197 = vadd.f32 %v1100, %v1196
      %v1198 = vpop.f32.mrf.mxu0
      %v1199 = vadd.f32 %v1102, %v1198
      %1200 = vdwg.mxu0
      %s1201 = scalar_lea.vmem %s1, 16
      %v1202 = vld [vmem:[%s1201] sm:$0xf]
      %v1203 = vld [vmem:[%s1201 + $0x4] sm:$0x3]
      %v1206 = vunpack.c.l.b16 %v1202
      %v1207 = vunpack.c.l.b16 %v1203
      %v1208 = vpack.c.b16 %v1207, %v1206
      %v1210 = vsel %vm694, %v1208, 0
      %1212 = vmatpush.bf16.msra.mxu0 0
      %1213 = vmatpush.bf16.msra.mxu0 0
      %1214 = vmatpush.bf16.msra.mxu0 0
      %1215 = vmatpush.bf16.msra.mxu0 0
      %1216 = vmatpush.bf16.msra.mxu0 0
      %1217 = vmatpush.bf16.msra.mxu0 0
      %1218 = vmatpush.bf16.msra.mxu0 0
      %1219 = vmatpush.bf16.msra.mxu0 %v1210
      %1220 = vmatmul.bf16.gmra.mxu0 %v968
      %v1221 = vpop.f32.mrf.mxu0
      %v1222 = vadd.f32 0.0, %v1221
      %v1223 = vpop.f32.mrf.mxu0
      %v1224 = vadd.f32 0.0, %v1223
      %1225 = vmatmul.bf16.gmra.mxu0 %v971
      %v1226 = vpop.f32.mrf.mxu0
      %v1227 = vadd.f32 0.0, %v1226
      %v1228 = vpop.f32.mrf.mxu0
      %v1229 = vadd.f32 0.0, %v1228
      %1230 = vmatmul.bf16.gmra.mxu0 %v974
      %v1231 = vpop.f32.mrf.mxu0
      %v1232 = vadd.f32 0.0, %v1231
      %v1233 = vpop.f32.mrf.mxu0
      %v1234 = vadd.f32 0.0, %v1233
      %1235 = vmatmul.bf16.gmra.mxu0 %v977
      %v1236 = vpop.f32.mrf.mxu0
      %v1237 = vadd.f32 0.0, %v1236
      %v1238 = vpop.f32.mrf.mxu0
      %v1239 = vadd.f32 0.0, %v1238
      %1240 = vmatmul.bf16.gmra.mxu0 %v980
      %v1241 = vpop.f32.mrf.mxu0
      %v1242 = vadd.f32 0.0, %v1241
      %v1243 = vpop.f32.mrf.mxu0
      %v1244 = vadd.f32 0.0, %v1243
      %1245 = vmatmul.bf16.gmra.mxu0 %v983
      %v1246 = vpop.f32.mrf.mxu0
      %v1247 = vadd.f32 0.0, %v1246
      %v1248 = vpop.f32.mrf.mxu0
      %v1249 = vadd.f32 0.0, %v1248
      %1250 = vmatmul.bf16.gmra.mxu0 %v986
      %v1251 = vpop.f32.mrf.mxu0
      %v1252 = vadd.f32 0.0, %v1251
      %v1253 = vpop.f32.mrf.mxu0
      %v1254 = vadd.f32 0.0, %v1253
      %1255 = vmatmul.bf16.gmra.mxu0 %v989
      %v1256 = vpop.f32.mrf.mxu0
      %v1257 = vadd.f32 0.0, %v1256
      %v1258 = vpop.f32.mrf.mxu0
      %v1259 = vadd.f32 0.0, %v1258
      %1260 = vmatmul.bf16.gmra.mxu0 %v992
      %v1261 = vpop.f32.mrf.mxu0
      %v1262 = vadd.f32 0.0, %v1261
      %v1263 = vpop.f32.mrf.mxu0
      %v1264 = vadd.f32 0.0, %v1263
      %1265 = vmatmul.bf16.gmra.mxu0 %v995
      %v1266 = vpop.f32.mrf.mxu0
      %v1267 = vadd.f32 0.0, %v1266
      %v1268 = vpop.f32.mrf.mxu0
      %v1269 = vadd.f32 0.0, %v1268
      %1270 = vmatmul.bf16.gmra.mxu0 %v998
      %v1271 = vpop.f32.mrf.mxu0
      %v1272 = vadd.f32 0.0, %v1271
      %v1273 = vpop.f32.mrf.mxu0
      %v1274 = vadd.f32 0.0, %v1273
      %1275 = vmatmul.bf16.gmra.mxu0 %v1001
      %v1276 = vpop.f32.mrf.mxu0
      %v1277 = vadd.f32 0.0, %v1276
      %v1278 = vpop.f32.mrf.mxu0
      %v1279 = vadd.f32 0.0, %v1278
      %1280 = vmatmul.bf16.gmra.mxu0 %v1004
      %v1281 = vpop.f32.mrf.mxu0
      %v1282 = vadd.f32 0.0, %v1281
      %v1283 = vpop.f32.mrf.mxu0
      %v1284 = vadd.f32 0.0, %v1283
      %1285 = vmatmul.bf16.gmra.mxu0 %v1007
      %v1286 = vpop.f32.mrf.mxu0
      %v1287 = vadd.f32 0.0, %v1286
      %v1288 = vpop.f32.mrf.mxu0
      %v1289 = vadd.f32 0.0, %v1288
      %1290 = vmatmul.bf16.gmra.mxu0 %v1010
      %v1291 = vpop.f32.mrf.mxu0
      %v1292 = vadd.f32 0.0, %v1291
      %v1293 = vpop.f32.mrf.mxu0
      %v1294 = vadd.f32 0.0, %v1293
      %1295 = vmatmul.bf16.gmra.mxu0 %v1007
      %v1296 = vpop.f32.mrf.mxu0
      %v1297 = vadd.f32 0.0, %v1296
      %v1298 = vpop.f32.mrf.mxu0
      %v1299 = vadd.f32 0.0, %v1298
      %1300 = vdwg.mxu0
      %v1301 = vadd.f32 %v1122, %v1222
      %v1302 = vadd.f32 %v1124, %v1224
      %v1303 = vadd.f32 %v1127, %v1227
      %v1304 = vadd.f32 %v1129, %v1229
      %v1305 = vadd.f32 %v1132, %v1232
      %v1306 = vadd.f32 %v1134, %v1234
      %v1307 = vadd.f32 %v1137, %v1237
      %v1308 = vadd.f32 %v1139, %v1239
      %v1309 = vadd.f32 %v1142, %v1242
      %v1310 = vadd.f32 %v1144, %v1244
      %v1311 = vadd.f32 %v1147, %v1247
      %v1312 = vadd.f32 %v1149, %v1249
      %v1313 = vadd.f32 %v1152, %v1252
      %v1314 = vadd.f32 %v1154, %v1254
      %v1315 = vadd.f32 %v1157, %v1257
      %v1316 = vadd.f32 %v1159, %v1259
      %v1317 = vadd.f32 %v1162, %v1262
      %v1318 = vadd.f32 %v1164, %v1264
      %v1319 = vadd.f32 %v1167, %v1267
      %v1320 = vadd.f32 %v1169, %v1269
      %v1321 = vadd.f32 %v1172, %v1272
      %v1322 = vadd.f32 %v1174, %v1274
      %v1323 = vadd.f32 %v1177, %v1277
      %v1324 = vadd.f32 %v1179, %v1279
      %v1325 = vadd.f32 %v1182, %v1282
      %v1326 = vadd.f32 %v1184, %v1284
      %v1327 = vadd.f32 %v1187, %v1287
      %v1328 = vadd.f32 %v1189, %v1289
      %v1329 = vadd.f32 %v1192, %v1292
      %v1330 = vadd.f32 %v1194, %v1294
      %v1331 = vadd.f32 %v1197, %v1297
      %v1332 = vadd.f32 %v1199, %v1299
      %v1333 = vperm.slane %v258, 0
      %v1334 = vmul.f32 %v1301, %v1333
      %v1335 = vmul.f32 %v1302, %v1333
      %v1336 = vmul.f32 %v1303, %v1333
      %v1337 = vmul.f32 %v1304, %v1333
      %v1338 = vmul.f32 %v1305, %v1333
      %v1339 = vmul.f32 %v1306, %v1333
      %v1340 = vmul.f32 %v1307, %v1333
      %v1341 = vmul.f32 %v1308, %v1333
      %v1342 = vmul.f32 %v1309, %v1333
      %v1343 = vmul.f32 %v1310, %v1333
      %v1344 = vmul.f32 %v1311, %v1333
      %v1345 = vmul.f32 %v1312, %v1333
      %v1346 = vmul.f32 %v1313, %v1333
      %v1347 = vmul.f32 %v1314, %v1333
      %v1348 = vmul.f32 %v1315, %v1333
      %v1349 = vmul.f32 %v1316, %v1333
      %v1350 = vmul.f32 %v1317, %v1333
      %v1351 = vmul.f32 %v1318, %v1333
      %v1352 = vmul.f32 %v1319, %v1333
      %v1353 = vmul.f32 %v1320, %v1333
      %v1354 = vmul.f32 %v1321, %v1333
      %v1355 = vmul.f32 %v1322, %v1333
      %v1356 = vmul.f32 %v1323, %v1333
      %v1357 = vmul.f32 %v1324, %v1333
      %v1358 = vmul.f32 %v1325, %v1333
      %v1359 = vmul.f32 %v1326, %v1333
      %v1360 = vmul.f32 %v1327, %v1333
      %v1361 = vmul.f32 %v1328, %v1333
      %v1362 = vmul.f32 %v1329, %v1333
      %v1363 = vmul.f32 %v1330, %v1333
      %v1364 = vmul.f32 %v1331, %v1333
      %v1365 = vmul.f32 %v1332, %v1333
      %v1366 = vperm.slane %v259, 0
      %v1367 = vadd.f32 %v1334, %v1366
      %v1368 = vadd.f32 %v1335, %v1366
      %v1369 = vadd.f32 %v1336, %v1366
      %v1370 = vadd.f32 %v1337, %v1366
      %v1371 = vadd.f32 %v1338, %v1366
      %v1372 = vadd.f32 %v1339, %v1366
      %v1373 = vadd.f32 %v1340, %v1366
      %v1374 = vadd.f32 %v1341, %v1366
      %v1375 = vadd.f32 %v1342, %v1366
      %v1376 = vadd.f32 %v1343, %v1366
      %v1377 = vadd.f32 %v1344, %v1366
      %v1378 = vadd.f32 %v1345, %v1366
      %v1379 = vadd.f32 %v1346, %v1366
      %v1380 = vadd.f32 %v1347, %v1366
      %v1381 = vadd.f32 %v1348, %v1366
      %v1382 = vadd.f32 %v1349, %v1366
      %v1383 = vadd.f32 %v1350, %v1366
      %v1384 = vadd.f32 %v1351, %v1366
      %v1385 = vadd.f32 %v1352, %v1366
      %v1386 = vadd.f32 %v1353, %v1366
      %v1387 = vadd.f32 %v1354, %v1366
      %v1388 = vadd.f32 %v1355, %v1366
      %v1389 = vadd.f32 %v1356, %v1366
      %v1390 = vadd.f32 %v1357, %v1366
      %v1391 = vadd.f32 %v1358, %v1366
      %v1392 = vadd.f32 %v1359, %v1366
      %v1393 = vadd.f32 %v1360, %v1366
      %v1394 = vadd.f32 %v1361, %v1366
      %v1395 = vadd.f32 %v1362, %v1366
      %v1396 = vadd.f32 %v1363, %v1366
      %v1397 = vadd.f32 %v1364, %v1366
      %v1398 = vadd.f32 %v1365, %v1366
      %v1399 = vmax.f32 %v1367, 0.0
      %v1400 = vmax.f32 %v1368, 0.0
      %v1401 = vmax.f32 %v1369, 0.0
      %v1402 = vmax.f32 %v1370, 0.0
      %v1403 = vmax.f32 %v1371, 0.0
      %v1404 = vmax.f32 %v1372, 0.0
      %v1405 = vmax.f32 %v1373, 0.0
      %v1406 = vmax.f32 %v1374, 0.0
      %v1407 = vmax.f32 %v1375, 0.0
      %v1408 = vmax.f32 %v1376, 0.0
      %v1409 = vmax.f32 %v1377, 0.0
      %v1410 = vmax.f32 %v1378, 0.0
      %v1411 = vmax.f32 %v1379, 0.0
      %v1412 = vmax.f32 %v1380, 0.0
      %v1413 = vmax.f32 %v1381, 0.0
      %v1414 = vmax.f32 %v1382, 0.0
      %v1415 = vmax.f32 %v1383, 0.0
      %v1416 = vmax.f32 %v1384, 0.0
      %v1417 = vmax.f32 %v1385, 0.0
      %v1418 = vmax.f32 %v1386, 0.0
      %v1419 = vmax.f32 %v1387, 0.0
      %v1420 = vmax.f32 %v1388, 0.0
      %v1421 = vmax.f32 %v1389, 0.0
      %v1422 = vmax.f32 %v1390, 0.0
      %v1423 = vmax.f32 %v1391, 0.0
      %v1424 = vmax.f32 %v1392, 0.0
      %v1425 = vmax.f32 %v1393, 0.0
      %v1426 = vmax.f32 %v1394, 0.0
      %v1427 = vmax.f32 %v1395, 0.0
      %v1428 = vmax.f32 %v1396, 0.0
      %v1429 = vmax.f32 %v1397, 0.0
      %v1430 = vmax.f32 %v1398, 0.0
      %v1431 = vld [vmem:[%s3 + $0x1] sm:$0x1]
      %v1432 = vld [vmem:[%s4 + $0x1] sm:$0x1]
      %v1449 = vrot.slane %v1401, 1
      %v1450 = vrot.slane %v1399, 1
      %v1451 = vrot.slane %v1403, 1
      %v1452 = vrot.slane %v1405, 1
      %v1453 = vrot.slane %v1407, 1
      %v1454 = vrot.slane %v1409, 1
      %v1455 = vrot.slane %v1411, 1
      %v1456 = vrot.slane %v1413, 1
      %v1457 = vrot.slane %v1415, 1
      %v1458 = vrot.slane %v1417, 1
      %v1459 = vrot.slane %v1419, 1
      %v1460 = vrot.slane %v1421, 1
      %v1461 = vrot.slane %v1423, 1
      %v1462 = vrot.slane %v1425, 1
      %v1463 = vrot.slane %v1427, 1
      %v1464 = vrot.slane %v1429, 1
      %v1497 = vrot.slane %v1401, 7
      %v1498 = vrot.slane %v1402, 7
      %v1499 = vsel %vm324, %v1497, %v1498
      %v1500 = vrot.slane %v1399, 7
      %v1501 = vrot.slane %v1400, 7
      %v1502 = vsel %vm324, %v1500, %v1501
      %v1503 = vrot.slane %v1403, 7
      %v1504 = vrot.slane %v1404, 7
      %v1505 = vsel %vm324, %v1503, %v1504
      %v1506 = vrot.slane %v1405, 7
      %v1507 = vrot.slane %v1406, 7
      %v1508 = vsel %vm324, %v1506, %v1507
      %v1509 = vrot.slane %v1407, 7
      %v1510 = vrot.slane %v1408, 7
      %v1511 = vsel %vm324, %v1509, %v1510
      %v1512 = vrot.slane %v1409, 7
      %v1513 = vrot.slane %v1410, 7
      %v1514 = vsel %vm324, %v1512, %v1513
      %v1515 = vrot.slane %v1411, 7
      %v1516 = vrot.slane %v1412, 7
      %v1517 = vsel %vm324, %v1515, %v1516
      %v1518 = vrot.slane %v1413, 7
      %v1519 = vrot.slane %v1414, 7
      %v1520 = vsel %vm324, %v1518, %v1519
      %v1521 = vrot.slane %v1415, 7
      %v1522 = vrot.slane %v1416, 7
      %v1523 = vsel %vm324, %v1521, %v1522
      %v1524 = vrot.slane %v1417, 7
      %v1525 = vrot.slane %v1418, 7
      %v1526 = vsel %vm324, %v1524, %v1525
      %v1527 = vrot.slane %v1419, 7
      %v1528 = vrot.slane %v1420, 7
      %v1529 = vsel %vm324, %v1527, %v1528
      %v1530 = vrot.slane %v1421, 7
      %v1531 = vrot.slane %v1422, 7
      %v1532 = vsel %vm324, %v1530, %v1531
      %v1533 = vrot.slane %v1423, 7
      %v1534 = vrot.slane %v1424, 7
      %v1535 = vsel %vm324, %v1533, %v1534
      %v1536 = vrot.slane %v1425, 7
      %v1537 = vrot.slane %v1426, 7
      %v1538 = vsel %vm324, %v1536, %v1537
      %v1539 = vrot.slane %v1427, 7
      %v1540 = vrot.slane %v1428, 7
      %v1541 = vsel %vm324, %v1539, %v1540
      %v1542 = vrot.slane %v1429, 7
      %v1543 = vrot.slane %v1430, 7
      %v1544 = vsel %vm324, %v1542, %v1543
      %v1593 = vrot.slane %v1402, 5
      %v1594 = vrot.slane %v1400, 5
      %v1595 = vrot.slane %v1404, 5
      %v1596 = vrot.slane %v1406, 5
      %v1597 = vrot.slane %v1408, 5
      %v1598 = vrot.slane %v1410, 5
      %v1599 = vrot.slane %v1412, 5
      %v1600 = vrot.slane %v1414, 5
      %v1601 = vrot.slane %v1416, 5
      %v1602 = vrot.slane %v1418, 5
      %v1603 = vrot.slane %v1420, 5
      %v1604 = vrot.slane %v1422, 5
      %v1605 = vrot.slane %v1424, 5
      %v1606 = vrot.slane %v1426, 5
      %v1607 = vrot.slane %v1428, 5
      %v1608 = vrot.slane %v1430, 5
      %v1625 = vsel %vm324, %v1449, %v1497
      %v1626 = vsel %vm324, %v1450, %v1500
      %v1627 = vsel %vm324, %v1451, %v1503
      %v1628 = vsel %vm324, %v1452, %v1506
      %v1629 = vsel %vm324, %v1453, %v1509
      %v1630 = vsel %vm324, %v1454, %v1512
      %v1631 = vsel %vm324, %v1455, %v1515
      %v1632 = vsel %vm324, %v1456, %v1518
      %v1633 = vsel %vm324, %v1457, %v1521
      %v1634 = vsel %vm324, %v1458, %v1524
      %v1635 = vsel %vm324, %v1459, %v1527
      %v1636 = vsel %vm324, %v1460, %v1530
      %v1637 = vsel %vm324, %v1461, %v1533
      %v1638 = vsel %vm324, %v1462, %v1536
      %v1639 = vsel %vm324, %v1463, %v1539
      %v1640 = vsel %vm324, %v1464, %v1542
      %v1641 = vsel %vm324, %v1498, %v1593
      %v1642 = vsel %vm324, %v1501, %v1594
      %v1643 = vsel %vm324, %v1504, %v1595
      %v1644 = vsel %vm324, %v1507, %v1596
      %v1645 = vsel %vm324, %v1510, %v1597
      %v1646 = vsel %vm324, %v1513, %v1598
      %v1647 = vsel %vm324, %v1516, %v1599
      %v1648 = vsel %vm324, %v1519, %v1600
      %v1649 = vsel %vm324, %v1522, %v1601
      %v1650 = vsel %vm324, %v1525, %v1602
      %v1651 = vsel %vm324, %v1528, %v1603
      %v1652 = vsel %vm324, %v1531, %v1604
      %v1653 = vsel %vm324, %v1534, %v1605
      %v1654 = vsel %vm324, %v1537, %v1606
      %v1655 = vsel %vm324, %v1540, %v1607
      %v1656 = vsel %vm324, %v1543, %v1608
      %v1689 = vrot.slane %v1625, 1
      %v1690 = vrot.slane %v1499, 1
      %v1691 = vsel %vm517, %v1689, %v1690
      %v1692 = vrot.slane %v1641, 1
      %v1693 = vsel %vm517, %v1690, %v1692
      %v1694 = vrot.slane %v1626, 1
      %v1695 = vrot.slane %v1502, 1
      %v1696 = vsel %vm517, %v1694, %v1695
      %v1697 = vrot.slane %v1642, 1
      %v1698 = vsel %vm517, %v1695, %v1697
      %v1699 = vrot.slane %v1627, 1
      %v1700 = vrot.slane %v1505, 1
      %v1701 = vsel %vm517, %v1699, %v1700
      %v1702 = vrot.slane %v1643, 1
      %v1703 = vsel %vm517, %v1700, %v1702
      %v1704 = vrot.slane %v1628, 1
      %v1705 = vrot.slane %v1508, 1
      %v1706 = vsel %vm517, %v1704, %v1705
      %v1707 = vrot.slane %v1644, 1
      %v1708 = vsel %vm517, %v1705, %v1707
      %v1709 = vrot.slane %v1629, 1
      %v1710 = vrot.slane %v1511, 1
      %v1711 = vsel %vm517, %v1709, %v1710
      %v1712 = vrot.slane %v1645, 1
      %v1713 = vsel %vm517, %v1710, %v1712
      %v1714 = vrot.slane %v1630, 1
      %v1715 = vrot.slane %v1514, 1
      %v1716 = vsel %vm517, %v1714, %v1715
      %v1717 = vrot.slane %v1646, 1
      %v1718 = vsel %vm517, %v1715, %v1717
      %v1719 = vrot.slane %v1631, 1
      %v1720 = vrot.slane %v1517, 1
      %v1721 = vsel %vm517, %v1719, %v1720
      %v1722 = vrot.slane %v1647, 1
      %v1723 = vsel %vm517, %v1720, %v1722
      %v1724 = vrot.slane %v1632, 1
      %v1725 = vrot.slane %v1520, 1
      %v1726 = vsel %vm517, %v1724, %v1725
      %v1727 = vrot.slane %v1648, 1
      %v1728 = vsel %vm517, %v1725, %v1727
      %v1729 = vrot.slane %v1633, 1
      %v1730 = vrot.slane %v1523, 1
      %v1731 = vsel %vm517, %v1729, %v1730
      %v1732 = vrot.slane %v1649, 1
      %v1733 = vsel %vm517, %v1730, %v1732
      %v1734 = vrot.slane %v1634, 1
      %v1735 = vrot.slane %v1526, 1
      %v1736 = vsel %vm517, %v1734, %v1735
      %v1737 = vrot.slane %v1650, 1
      %v1738 = vsel %vm517, %v1735, %v1737
      %v1739 = vrot.slane %v1635, 1
      %v1740 = vrot.slane %v1529, 1
      %v1741 = vsel %vm517, %v1739, %v1740
      %v1742 = vrot.slane %v1651, 1
      %v1743 = vsel %vm517, %v1740, %v1742
      %v1744 = vrot.slane %v1636, 1
      %v1745 = vrot.slane %v1532, 1
      %v1746 = vsel %vm517, %v1744, %v1745
      %v1747 = vrot.slane %v1652, 1
      %v1748 = vsel %vm517, %v1745, %v1747
      %v1749 = vrot.slane %v1637, 1
      %v1750 = vrot.slane %v1535, 1
      %v1751 = vsel %vm517, %v1749, %v1750
      %v1752 = vrot.slane %v1653, 1
      %v1753 = vsel %vm517, %v1750, %v1752
      %v1754 = vrot.slane %v1638, 1
      %v1755 = vrot.slane %v1538, 1
      %v1756 = vsel %vm517, %v1754, %v1755
      %v1757 = vrot.slane %v1654, 1
      %v1758 = vsel %vm517, %v1755, %v1757
      %v1759 = vrot.slane %v1639, 1
      %v1760 = vrot.slane %v1541, 1
      %v1761 = vsel %vm517, %v1759, %v1760
      %v1762 = vrot.slane %v1655, 1
      %v1763 = vsel %vm517, %v1760, %v1762
      %v1764 = vrot.slane %v1640, 1
      %v1765 = vrot.slane %v1544, 1
      %v1766 = vsel %vm517, %v1764, %v1765
      %v1767 = vrot.slane %v1656, 1
      %v1768 = vsel %vm517, %v1765, %v1767
      %1769 = vrot.lane.b32.xlu0 %v1691, 4
      %v1770 = vpop.permute.xlu0 %1769
      %1771 = vrot.lane.b32.xlu0 %v1693, 4
      %v1772 = vpop.permute.xlu0 %1771
      %1773 = vrot.lane.b32.xlu0 %v1696, 4
      %v1774 = vpop.permute.xlu0 %1773
      %1775 = vrot.lane.b32.xlu0 %v1698, 4
      %v1776 = vpop.permute.xlu0 %1775
      %1777 = vrot.lane.b32.xlu0 %v1701, 4
      %v1778 = vpop.permute.xlu0 %1777
      %1779 = vrot.lane.b32.xlu0 %v1703, 4
      %v1780 = vpop.permute.xlu0 %1779
      %1781 = vrot.lane.b32.xlu0 %v1706, 4
      %v1782 = vpop.permute.xlu0 %1781
      %1783 = vrot.lane.b32.xlu0 %v1708, 4
      %v1784 = vpop.permute.xlu0 %1783
      %1785 = vrot.lane.b32.xlu0 %v1711, 4
      %v1786 = vpop.permute.xlu0 %1785
      %1787 = vrot.lane.b32.xlu0 %v1713, 4
      %v1788 = vpop.permute.xlu0 %1787
      %1789 = vrot.lane.b32.xlu0 %v1716, 4
      %v1790 = vpop.permute.xlu0 %1789
      %1791 = vrot.lane.b32.xlu0 %v1718, 4
      %v1792 = vpop.permute.xlu0 %1791
      %1793 = vrot.lane.b32.xlu0 %v1721, 4
      %v1794 = vpop.permute.xlu0 %1793
      %1795 = vrot.lane.b32.xlu0 %v1723, 4
      %v1796 = vpop.permute.xlu0 %1795
      %1797 = vrot.lane.b32.xlu0 %v1726, 4
      %v1798 = vpop.permute.xlu0 %1797
      %1799 = vrot.lane.b32.xlu0 %v1728, 4
      %v1800 = vpop.permute.xlu0 %1799
      %1801 = vrot.lane.b32.xlu0 %v1731, 4
      %v1802 = vpop.permute.xlu0 %1801
      %1803 = vrot.lane.b32.xlu0 %v1733, 4
      %v1804 = vpop.permute.xlu0 %1803
      %1805 = vrot.lane.b32.xlu0 %v1736, 4
      %v1806 = vpop.permute.xlu0 %1805
      %1807 = vrot.lane.b32.xlu0 %v1738, 4
      %v1808 = vpop.permute.xlu0 %1807
      %1809 = vrot.lane.b32.xlu0 %v1741, 4
      %v1810 = vpop.permute.xlu0 %1809
      %1811 = vrot.lane.b32.xlu0 %v1743, 4
      %v1812 = vpop.permute.xlu0 %1811
      %1813 = vrot.lane.b32.xlu0 %v1746, 4
      %v1814 = vpop.permute.xlu0 %1813
      %1815 = vrot.lane.b32.xlu0 %v1748, 4
      %v1816 = vpop.permute.xlu0 %1815
      %1817 = vrot.lane.b32.xlu0 %v1751, 4
      %v1818 = vpop.permute.xlu0 %1817
      %1819 = vrot.lane.b32.xlu0 %v1753, 4
      %v1820 = vpop.permute.xlu0 %1819
      %1821 = vrot.lane.b32.xlu0 %v1756, 4
      %v1822 = vpop.permute.xlu0 %1821
      %1823 = vrot.lane.b32.xlu0 %v1758, 4
      %v1824 = vpop.permute.xlu0 %1823
      %1825 = vrot.lane.b32.xlu0 %v1761, 4
      %v1826 = vpop.permute.xlu0 %1825
      %1827 = vrot.lane.b32.xlu0 %v1763, 4
      %v1828 = vpop.permute.xlu0 %1827
      %1829 = vrot.lane.b32.xlu0 %v1766, 4
      %v1830 = vpop.permute.xlu0 %1829
      %1831 = vrot.lane.b32.xlu0 %v1768, 4
      %v1832 = vpop.permute.xlu0 %1831
      %v1865 = vrot.slane %v1625, 2
      %v1866 = vrot.slane %v1499, 2
      %v1867 = vsel %vm694, %v1865, %v1866
      %v1868 = vrot.slane %v1641, 2
      %v1869 = vsel %vm694, %v1866, %v1868
      %v1870 = vrot.slane %v1626, 2
      %v1871 = vrot.slane %v1502, 2
      %v1872 = vsel %vm694, %v1870, %v1871
      %v1873 = vrot.slane %v1642, 2
      %v1874 = vsel %vm694, %v1871, %v1873
      %v1875 = vrot.slane %v1627, 2
      %v1876 = vrot.slane %v1505, 2
      %v1877 = vsel %vm694, %v1875, %v1876
      %v1878 = vrot.slane %v1643, 2
      %v1879 = vsel %vm694, %v1876, %v1878
      %v1880 = vrot.slane %v1628, 2
      %v1881 = vrot.slane %v1508, 2
      %v1882 = vsel %vm694, %v1880, %v1881
      %v1883 = vrot.slane %v1644, 2
      %v1884 = vsel %vm694, %v1881, %v1883
      %v1885 = vrot.slane %v1629, 2
      %v1886 = vrot.slane %v1511, 2
      %v1887 = vsel %vm694, %v1885, %v1886
      %v1888 = vrot.slane %v1645, 2
      %v1889 = vsel %vm694, %v1886, %v1888
      %v1890 = vrot.slane %v1630, 2
      %v1891 = vrot.slane %v1514, 2
      %v1892 = vsel %vm694, %v1890, %v1891
      %v1893 = vrot.slane %v1646, 2
      %v1894 = vsel %vm694, %v1891, %v1893
      %v1895 = vrot.slane %v1631, 2
      %v1896 = vrot.slane %v1517, 2
      %v1897 = vsel %vm694, %v1895, %v1896
      %v1898 = vrot.slane %v1647, 2
      %v1899 = vsel %vm694, %v1896, %v1898
      %v1900 = vrot.slane %v1632, 2
      %v1901 = vrot.slane %v1520, 2
      %v1902 = vsel %vm694, %v1900, %v1901
      %v1903 = vrot.slane %v1648, 2
      %v1904 = vsel %vm694, %v1901, %v1903
      %v1905 = vrot.slane %v1633, 2
      %v1906 = vrot.slane %v1523, 2
      %v1907 = vsel %vm694, %v1905, %v1906
      %v1908 = vrot.slane %v1649, 2
      %v1909 = vsel %vm694, %v1906, %v1908
      %v1910 = vrot.slane %v1634, 2
      %v1911 = vrot.slane %v1526, 2
      %v1912 = vsel %vm694, %v1910, %v1911
      %v1913 = vrot.slane %v1650, 2
      %v1914 = vsel %vm694, %v1911, %v1913
      %v1915 = vrot.slane %v1635, 2
      %v1916 = vrot.slane %v1529, 2
      %v1917 = vsel %vm694, %v1915, %v1916
      %v1918 = vrot.slane %v1651, 2
      %v1919 = vsel %vm694, %v1916, %v1918
      %v1920 = vrot.slane %v1636, 2
      %v1921 = vrot.slane %v1532, 2
      %v1922 = vsel %vm694, %v1920, %v1921
      %v1923 = vrot.slane %v1652, 2
      %v1924 = vsel %vm694, %v1921, %v1923
      %v1925 = vrot.slane %v1637, 2
      %v1926 = vrot.slane %v1535, 2
      %v1927 = vsel %vm694, %v1925, %v1926
      %v1928 = vrot.slane %v1653, 2
      %v1929 = vsel %vm694, %v1926, %v1928
      %v1930 = vrot.slane %v1638, 2
      %v1931 = vrot.slane %v1538, 2
      %v1932 = vsel %vm694, %v1930, %v1931
      %v1933 = vrot.slane %v1654, 2
      %v1934 = vsel %vm694, %v1931, %v1933
      %v1935 = vrot.slane %v1639, 2
      %v1936 = vrot.slane %v1541, 2
      %v1937 = vsel %vm694, %v1935, %v1936
      %v1938 = vrot.slane %v1655, 2
      %v1939 = vsel %vm694, %v1936, %v1938
      %v1940 = vrot.slane %v1640, 2
      %v1941 = vrot.slane %v1544, 2
      %v1942 = vsel %vm694, %v1940, %v1941
      %v1943 = vrot.slane %v1656, 2
      %v1944 = vsel %vm694, %v1941, %v1943
      %1945 = vrot.lane.b32.xlu0 %v1867, 8
      %v1946 = vpop.permute.xlu0 %1945
      %1947 = vrot.lane.b32.xlu0 %v1869, 8
      %v1948 = vpop.permute.xlu0 %1947
      %1949 = vrot.lane.b32.xlu0 %v1872, 8
      %v1950 = vpop.permute.xlu0 %1949
      %1951 = vrot.lane.b32.xlu0 %v1874, 8
      %v1952 = vpop.permute.xlu0 %1951
      %1953 = vrot.lane.b32.xlu0 %v1877, 8
      %v1954 = vpop.permute.xlu0 %1953
      %1955 = vrot.lane.b32.xlu0 %v1879, 8
      %v1956 = vpop.permute.xlu0 %1955
      %1957 = vrot.lane.b32.xlu0 %v1882, 8
      %v1958 = vpop.permute.xlu0 %1957
      %1959 = vrot.lane.b32.xlu0 %v1884, 8
      %v1960 = vpop.permute.xlu0 %1959
      %1961 = vrot.lane.b32.xlu0 %v1887, 8
      %v1962 = vpop.permute.xlu0 %1961
      %1963 = vrot.lane.b32.xlu0 %v1889, 8
      %v1964 = vpop.permute.xlu0 %1963
      %1965 = vrot.lane.b32.xlu0 %v1892, 8
      %v1966 = vpop.permute.xlu0 %1965
      %1967 = vrot.lane.b32.xlu0 %v1894, 8
      %v1968 = vpop.permute.xlu0 %1967
      %1969 = vrot.lane.b32.xlu0 %v1897, 8
      %v1970 = vpop.permute.xlu0 %1969
      %1971 = vrot.lane.b32.xlu0 %v1899, 8
      %v1972 = vpop.permute.xlu0 %1971
      %1973 = vrot.lane.b32.xlu0 %v1902, 8
      %v1974 = vpop.permute.xlu0 %1973
      %1975 = vrot.lane.b32.xlu0 %v1904, 8
      %v1976 = vpop.permute.xlu0 %1975
      %1977 = vrot.lane.b32.xlu0 %v1907, 8
      %v1978 = vpop.permute.xlu0 %1977
      %1979 = vrot.lane.b32.xlu0 %v1909, 8
      %v1980 = vpop.permute.xlu0 %1979
      %1981 = vrot.lane.b32.xlu0 %v1912, 8
      %v1982 = vpop.permute.xlu0 %1981
      %1983 = vrot.lane.b32.xlu0 %v1914, 8
      %v1984 = vpop.permute.xlu0 %1983
      %1985 = vrot.lane.b32.xlu0 %v1917, 8
      %v1986 = vpop.permute.xlu0 %1985
      %1987 = vrot.lane.b32.xlu0 %v1919, 8
      %v1988 = vpop.permute.xlu0 %1987
      %1989 = vrot.lane.b32.xlu0 %v1922, 8
      %v1990 = vpop.permute.xlu0 %1989
      %1991 = vrot.lane.b32.xlu0 %v1924, 8
      %v1992 = vpop.permute.xlu0 %1991
      %1993 = vrot.lane.b32.xlu0 %v1927, 8
      %v1994 = vpop.permute.xlu0 %1993
      %1995 = vrot.lane.b32.xlu0 %v1929, 8
      %v1996 = vpop.permute.xlu0 %1995
      %1997 = vrot.lane.b32.xlu0 %v1932, 8
      %v1998 = vpop.permute.xlu0 %1997
      %1999 = vrot.lane.b32.xlu0 %v1934, 8
      %v2000 = vpop.permute.xlu0 %1999
      %2001 = vrot.lane.b32.xlu0 %v1937, 8
      %v2002 = vpop.permute.xlu0 %2001
      %2003 = vrot.lane.b32.xlu0 %v1939, 8
      %v2004 = vpop.permute.xlu0 %2003
      %2005 = vrot.lane.b32.xlu0 %v1942, 8
      %v2006 = vpop.permute.xlu0 %2005
      %2007 = vrot.lane.b32.xlu0 %v1944, 8
      %v2008 = vpop.permute.xlu0 %2007
      %v2041 = vsel %vm871, %v1625, %v1770
      %v2042 = vsel %vm871, %v1499, %v1772
      %v2043 = vsel %vm871, %v1626, %v1774
      %v2044 = vsel %vm871, %v1502, %v1776
      %v2045 = vsel %vm871, %v1627, %v1778
      %v2046 = vsel %vm871, %v1505, %v1780
      %v2047 = vsel %vm871, %v1628, %v1782
      %v2048 = vsel %vm871, %v1508, %v1784
      %v2049 = vsel %vm871, %v1629, %v1786
      %v2050 = vsel %vm871, %v1511, %v1788
      %v2051 = vsel %vm871, %v1630, %v1790
      %v2052 = vsel %vm871, %v1514, %v1792
      %v2053 = vsel %vm871, %v1631, %v1794
      %v2054 = vsel %vm871, %v1517, %v1796
      %v2055 = vsel %vm871, %v1632, %v1798
      %v2056 = vsel %vm871, %v1520, %v1800
      %v2057 = vsel %vm871, %v1633, %v1802
      %v2058 = vsel %vm871, %v1523, %v1804
      %v2059 = vsel %vm871, %v1634, %v1806
      %v2060 = vsel %vm871, %v1526, %v1808
      %v2061 = vsel %vm871, %v1635, %v1810
      %v2062 = vsel %vm871, %v1529, %v1812
      %v2063 = vsel %vm871, %v1636, %v1814
      %v2064 = vsel %vm871, %v1532, %v1816
      %v2065 = vsel %vm871, %v1637, %v1818
      %v2066 = vsel %vm871, %v1535, %v1820
      %v2067 = vsel %vm871, %v1638, %v1822
      %v2068 = vsel %vm871, %v1538, %v1824
      %v2069 = vsel %vm871, %v1639, %v1826
      %v2070 = vsel %vm871, %v1541, %v1828
      %v2071 = vsel %vm871, %v1640, %v1830
      %v2072 = vsel %vm871, %v1544, %v1832
      %v2073 = vsel %vm904, %v2041, %v1946
      %v2074 = vsel %vm904, %v2042, %v1948
      %v2075 = vsel %vm904, %v2043, %v1950
      %v2076 = vsel %vm904, %v2044, %v1952
      %v2077 = vsel %vm904, %v2045, %v1954
      %v2078 = vsel %vm904, %v2046, %v1956
      %v2079 = vsel %vm904, %v2047, %v1958
      %v2080 = vsel %vm904, %v2048, %v1960
      %v2081 = vsel %vm904, %v2049, %v1962
      %v2082 = vsel %vm904, %v2050, %v1964
      %v2083 = vsel %vm904, %v2051, %v1966
      %v2084 = vsel %vm904, %v2052, %v1968
      %v2085 = vsel %vm904, %v2053, %v1970
      %v2086 = vsel %vm904, %v2054, %v1972
      %v2087 = vsel %vm904, %v2055, %v1974
      %v2088 = vsel %vm904, %v2056, %v1976
      %v2089 = vsel %vm904, %v2057, %v1978
      %v2090 = vsel %vm904, %v2058, %v1980
      %v2091 = vsel %vm904, %v2059, %v1982
      %v2092 = vsel %vm904, %v2060, %v1984
      %v2093 = vsel %vm904, %v2061, %v1986
      %v2094 = vsel %vm904, %v2062, %v1988
      %v2095 = vsel %vm904, %v2063, %v1990
      %v2096 = vsel %vm904, %v2064, %v1992
      %v2097 = vsel %vm904, %v2065, %v1994
      %v2098 = vsel %vm904, %v2066, %v1996
      %v2099 = vsel %vm904, %v2067, %v1998
      %v2100 = vsel %vm904, %v2068, %v2000
      %v2101 = vsel %vm904, %v2069, %v2002
      %v2102 = vsel %vm904, %v2070, %v2004
      %v2103 = vsel %vm904, %v2071, %v2006
      %v2104 = vsel %vm904, %v2072, %v2008
      %v2105 = vpack.c.bf16 %v2074, %v2073
      %v2106 = vpack.c.bf16 %v2076, %v2075
      %v2107 = vpack.c.bf16 %v2078, %v2077
      %v2108 = vpack.c.bf16 %v2080, %v2079
      %v2109 = vpack.c.bf16 %v2082, %v2081
      %v2110 = vpack.c.bf16 %v2084, %v2083
      %v2111 = vpack.c.bf16 %v2086, %v2085
      %v2112 = vpack.c.bf16 %v2088, %v2087
      %v2113 = vpack.c.bf16 %v2090, %v2089
      %v2114 = vpack.c.bf16 %v2092, %v2091
      %v2115 = vpack.c.bf16 %v2094, %v2093
      %v2116 = vpack.c.bf16 %v2096, %v2095
      %v2117 = vpack.c.bf16 %v2098, %v2097
      %v2118 = vpack.c.bf16 %v2100, %v2099
      %v2119 = vpack.c.bf16 %v2102, %v2101
      %v2120 = vld [vmem:[%s2] sm:$0xf]
      %v2121 = vld [vmem:[%s2 + $0x4] sm:$0x3]
      %v2122 = vpack.c.bf16 %v2104, %v2103
      %s2123 = scalar_lea.vmem %s2, 8
      %v2124 = vld [vmem:[%s2123] sm:$0xf]
      %v2125 = vld [vmem:[%s2123 + $0x4] sm:$0x3]
      %v2128 = vunpack.c.l.b16 %v2124
      %v2129 = vunpack.c.l.b16 %v2125
      %v2130 = vpack.c.b16 %v2129, %v2128
      %v2132 = vsel %vm963, %v2106, 0
      %v2135 = vsel %vm963, %v2105, 0
      %v2138 = vsel %vm963, %v2107, 0
      %v2141 = vsel %vm963, %v2108, 0
      %v2144 = vsel %vm963, %v2109, 0
      %v2147 = vsel %vm963, %v2110, 0
      %v2150 = vsel %vm963, %v2111, 0
      %v2153 = vsel %vm963, %v2112, 0
      %v2156 = vsel %vm963, %v2113, 0
      %v2159 = vsel %vm963, %v2114, 0
      %v2162 = vsel %vm963, %v2115, 0
      %v2165 = vsel %vm963, %v2116, 0
      %v2168 = vsel %vm963, %v2117, 0
      %v2171 = vsel %vm963, %v2118, 0
      %v2174 = vsel %vm963, %v2119, 0
      %v2177 = vsel %vm963, %v2122, 0
      %v2180 = vsel %vm694, %v2130, 0
      %2182 = vmatpush.bf16.msra.mxu0 0
      %2183 = vmatpush.bf16.msra.mxu0 0
      %2184 = vmatpush.bf16.msra.mxu0 0
      %2185 = vmatpush.bf16.msra.mxu0 0
      %2186 = vmatpush.bf16.msra.mxu0 0
      %2187 = vmatpush.bf16.msra.mxu0 0
      %2188 = vmatpush.bf16.msra.mxu0 0
      %2189 = vmatpush.bf16.msra.mxu0 %v2180
      %2190 = vmatmul.bf16.gmra.mxu0 %v2132
      %v2191 = vpop.f32.mrf.mxu0
      %v2192 = vadd.f32 0.0, %v2191
      %v2193 = vpop.f32.mrf.mxu0
      %v2194 = vadd.f32 0.0, %v2193
      %2195 = vmatmul.bf16.gmra.mxu0 %v2135
      %v2196 = vpop.f32.mrf.mxu0
      %v2197 = vadd.f32 0.0, %v2196
      %v2198 = vpop.f32.mrf.mxu0
      %v2199 = vadd.f32 0.0, %v2198
      %2200 = vmatmul.bf16.gmra.mxu0 %v2138
      %v2201 = vpop.f32.mrf.mxu0
      %v2202 = vadd.f32 0.0, %v2201
      %v2203 = vpop.f32.mrf.mxu0
      %v2204 = vadd.f32 0.0, %v2203
      %2205 = vmatmul.bf16.gmra.mxu0 %v2141
      %v2206 = vpop.f32.mrf.mxu0
      %v2207 = vadd.f32 0.0, %v2206
      %v2208 = vpop.f32.mrf.mxu0
      %v2209 = vadd.f32 0.0, %v2208
      %2210 = vmatmul.bf16.gmra.mxu0 %v2144
      %v2211 = vpop.f32.mrf.mxu0
      %v2212 = vadd.f32 0.0, %v2211
      %v2213 = vpop.f32.mrf.mxu0
      %v2214 = vadd.f32 0.0, %v2213
      %2215 = vmatmul.bf16.gmra.mxu0 %v2147
      %v2216 = vpop.f32.mrf.mxu0
      %v2217 = vadd.f32 0.0, %v2216
      %v2218 = vpop.f32.mrf.mxu0
      %v2219 = vadd.f32 0.0, %v2218
      %2220 = vmatmul.bf16.gmra.mxu0 %v2150
      %v2221 = vpop.f32.mrf.mxu0
      %v2222 = vadd.f32 0.0, %v2221
      %v2223 = vpop.f32.mrf.mxu0
      %v2224 = vadd.f32 0.0, %v2223
      %2225 = vmatmul.bf16.gmra.mxu0 %v2153
      %v2226 = vpop.f32.mrf.mxu0
      %v2227 = vadd.f32 0.0, %v2226
      %v2228 = vpop.f32.mrf.mxu0
      %v2229 = vadd.f32 0.0, %v2228
      %2230 = vmatmul.bf16.gmra.mxu0 %v2156
      %v2231 = vpop.f32.mrf.mxu0
      %v2232 = vadd.f32 0.0, %v2231
      %v2233 = vpop.f32.mrf.mxu0
      %v2234 = vadd.f32 0.0, %v2233
      %2235 = vmatmul.bf16.gmra.mxu0 %v2159
      %v2236 = vpop.f32.mrf.mxu0
      %v2237 = vadd.f32 0.0, %v2236
      %v2238 = vpop.f32.mrf.mxu0
      %v2239 = vadd.f32 0.0, %v2238
      %2240 = vmatmul.bf16.gmra.mxu0 %v2162
      %v2241 = vpop.f32.mrf.mxu0
      %v2242 = vadd.f32 0.0, %v2241
      %v2243 = vpop.f32.mrf.mxu0
      %v2244 = vadd.f32 0.0, %v2243
      %2245 = vmatmul.bf16.gmra.mxu0 %v2165
      %v2246 = vpop.f32.mrf.mxu0
      %v2247 = vadd.f32 0.0, %v2246
      %v2248 = vpop.f32.mrf.mxu0
      %v2249 = vadd.f32 0.0, %v2248
      %2250 = vmatmul.bf16.gmra.mxu0 %v2168
      %v2251 = vpop.f32.mrf.mxu0
      %v2252 = vadd.f32 0.0, %v2251
      %v2253 = vpop.f32.mrf.mxu0
      %v2254 = vadd.f32 0.0, %v2253
      %2255 = vmatmul.bf16.gmra.mxu0 %v2171
      %v2256 = vpop.f32.mrf.mxu0
      %v2257 = vadd.f32 0.0, %v2256
      %v2258 = vpop.f32.mrf.mxu0
      %v2259 = vadd.f32 0.0, %v2258
      %2260 = vmatmul.bf16.gmra.mxu0 %v2174
      %v2261 = vpop.f32.mrf.mxu0
      %v2262 = vadd.f32 0.0, %v2261
      %v2263 = vpop.f32.mrf.mxu0
      %v2264 = vadd.f32 0.0, %v2263
      %2265 = vmatmul.bf16.gmra.mxu0 %v2177
      %v2266 = vpop.f32.mrf.mxu0
      %v2267 = vadd.f32 0.0, %v2266
      %v2268 = vpop.f32.mrf.mxu0
      %v2269 = vadd.f32 0.0, %v2268
      %2270 = vdwg.mxu0
      %v2273 = vunpack.c.l.b16 %v2120
      %v2274 = vunpack.c.l.b16 %v2121
      %v2275 = vpack.c.b16 %v2274, %v2273
      %v2277 = vsel %vm694, %v2275, 0
      %2279 = vmatpush.bf16.msra.mxu0 0
      %2280 = vmatpush.bf16.msra.mxu0 0
      %2281 = vmatpush.bf16.msra.mxu0 0
      %2282 = vmatpush.bf16.msra.mxu0 0
      %2283 = vmatpush.bf16.msra.mxu0 0
      %2284 = vmatpush.bf16.msra.mxu0 0
      %2285 = vmatpush.bf16.msra.mxu0 0
      %2286 = vmatpush.bf16.msra.mxu0 %v2277
      %2287 = vmatmul.bf16.gmra.mxu0 %v2135
      %v2288 = vpop.f32.mrf.mxu0
      %v2289 = vadd.f32 %v2192, %v2288
      %v2290 = vpop.f32.mrf.mxu0
      %v2291 = vadd.f32 %v2194, %v2290
      %2292 = vmatmul.bf16.gmra.mxu0 %v2132
      %v2293 = vpop.f32.mrf.mxu0
      %v2294 = vadd.f32 %v2197, %v2293
      %v2295 = vpop.f32.mrf.mxu0
      %v2296 = vadd.f32 %v2199, %v2295
      %2297 = vmatmul.bf16.gmra.mxu0 %v2135
      %v2298 = vpop.f32.mrf.mxu0
      %v2299 = vadd.f32 %v2202, %v2298
      %v2300 = vpop.f32.mrf.mxu0
      %v2301 = vadd.f32 %v2204, %v2300
      %2302 = vmatmul.bf16.gmra.mxu0 %v2138
      %v2303 = vpop.f32.mrf.mxu0
      %v2304 = vadd.f32 %v2207, %v2303
      %v2305 = vpop.f32.mrf.mxu0
      %v2306 = vadd.f32 %v2209, %v2305
      %2307 = vmatmul.bf16.gmra.mxu0 %v2141
      %v2308 = vpop.f32.mrf.mxu0
      %v2309 = vadd.f32 %v2212, %v2308
      %v2310 = vpop.f32.mrf.mxu0
      %v2311 = vadd.f32 %v2214, %v2310
      %2312 = vmatmul.bf16.gmra.mxu0 %v2144
      %v2313 = vpop.f32.mrf.mxu0
      %v2314 = vadd.f32 %v2217, %v2313
      %v2315 = vpop.f32.mrf.mxu0
      %v2316 = vadd.f32 %v2219, %v2315
      %2317 = vmatmul.bf16.gmra.mxu0 %v2147
      %v2318 = vpop.f32.mrf.mxu0
      %v2319 = vadd.f32 %v2222, %v2318
      %v2320 = vpop.f32.mrf.mxu0
      %v2321 = vadd.f32 %v2224, %v2320
      %2322 = vmatmul.bf16.gmra.mxu0 %v2150
      %v2323 = vpop.f32.mrf.mxu0
      %v2324 = vadd.f32 %v2227, %v2323
      %v2325 = vpop.f32.mrf.mxu0
      %v2326 = vadd.f32 %v2229, %v2325
      %2327 = vmatmul.bf16.gmra.mxu0 %v2153
      %v2328 = vpop.f32.mrf.mxu0
      %v2329 = vadd.f32 %v2232, %v2328
      %v2330 = vpop.f32.mrf.mxu0
      %v2331 = vadd.f32 %v2234, %v2330
      %2332 = vmatmul.bf16.gmra.mxu0 %v2156
      %v2333 = vpop.f32.mrf.mxu0
      %v2334 = vadd.f32 %v2237, %v2333
      %v2335 = vpop.f32.mrf.mxu0
      %v2336 = vadd.f32 %v2239, %v2335
      %2337 = vmatmul.bf16.gmra.mxu0 %v2159
      %v2338 = vpop.f32.mrf.mxu0
      %v2339 = vadd.f32 %v2242, %v2338
      %v2340 = vpop.f32.mrf.mxu0
      %v2341 = vadd.f32 %v2244, %v2340
      %2342 = vmatmul.bf16.gmra.mxu0 %v2162
      %v2343 = vpop.f32.mrf.mxu0
      %v2344 = vadd.f32 %v2247, %v2343
      %v2345 = vpop.f32.mrf.mxu0
      %v2346 = vadd.f32 %v2249, %v2345
      %2347 = vmatmul.bf16.gmra.mxu0 %v2165
      %v2348 = vpop.f32.mrf.mxu0
      %v2349 = vadd.f32 %v2252, %v2348
      %v2350 = vpop.f32.mrf.mxu0
      %v2351 = vadd.f32 %v2254, %v2350
      %2352 = vmatmul.bf16.gmra.mxu0 %v2168
      %v2353 = vpop.f32.mrf.mxu0
      %v2354 = vadd.f32 %v2257, %v2353
      %v2355 = vpop.f32.mrf.mxu0
      %v2356 = vadd.f32 %v2259, %v2355
      %2357 = vmatmul.bf16.gmra.mxu0 %v2171
      %v2358 = vpop.f32.mrf.mxu0
      %v2359 = vadd.f32 %v2262, %v2358
      %v2360 = vpop.f32.mrf.mxu0
      %v2361 = vadd.f32 %v2264, %v2360
      %2362 = vmatmul.bf16.gmra.mxu0 %v2174
      %v2363 = vpop.f32.mrf.mxu0
      %v2364 = vadd.f32 %v2267, %v2363
      %v2365 = vpop.f32.mrf.mxu0
      %v2366 = vadd.f32 %v2269, %v2365
      %2367 = vdwg.mxu0
      %s2368 = scalar_lea.vmem %s2, 16
      %v2369 = vld [vmem:[%s2368] sm:$0xf]
      %v2370 = vld [vmem:[%s2368 + $0x4] sm:$0x3]
      %v2373 = vunpack.c.l.b16 %v2369
      %v2374 = vunpack.c.l.b16 %v2370
      %v2375 = vpack.c.b16 %v2374, %v2373
      %v2377 = vsel %vm694, %v2375, 0
      %2379 = vmatpush.bf16.msra.mxu0 0
      %2380 = vmatpush.bf16.msra.mxu0 0
      %2381 = vmatpush.bf16.msra.mxu0 0
      %2382 = vmatpush.bf16.msra.mxu0 0
      %2383 = vmatpush.bf16.msra.mxu0 0
      %2384 = vmatpush.bf16.msra.mxu0 0
      %2385 = vmatpush.bf16.msra.mxu0 0
      %2386 = vmatpush.bf16.msra.mxu0 %v2377
      %2387 = vmatmul.bf16.gmra.mxu0 %v2135
      %v2388 = vpop.f32.mrf.mxu0
      %v2389 = vadd.f32 0.0, %v2388
      %v2390 = vpop.f32.mrf.mxu0
      %v2391 = vadd.f32 0.0, %v2390
      %2392 = vmatmul.bf16.gmra.mxu0 %v2138
      %v2393 = vpop.f32.mrf.mxu0
      %v2394 = vadd.f32 0.0, %v2393
      %v2395 = vpop.f32.mrf.mxu0
      %v2396 = vadd.f32 0.0, %v2395
      %2397 = vmatmul.bf16.gmra.mxu0 %v2141
      %v2398 = vpop.f32.mrf.mxu0
      %v2399 = vadd.f32 0.0, %v2398
      %v2400 = vpop.f32.mrf.mxu0
      %v2401 = vadd.f32 0.0, %v2400
      %2402 = vmatmul.bf16.gmra.mxu0 %v2144
      %v2403 = vpop.f32.mrf.mxu0
      %v2404 = vadd.f32 0.0, %v2403
      %v2405 = vpop.f32.mrf.mxu0
      %v2406 = vadd.f32 0.0, %v2405
      %2407 = vmatmul.bf16.gmra.mxu0 %v2147
      %v2408 = vpop.f32.mrf.mxu0
      %v2409 = vadd.f32 0.0, %v2408
      %v2410 = vpop.f32.mrf.mxu0
      %v2411 = vadd.f32 0.0, %v2410
      %2412 = vmatmul.bf16.gmra.mxu0 %v2150
      %v2413 = vpop.f32.mrf.mxu0
      %v2414 = vadd.f32 0.0, %v2413
      %v2415 = vpop.f32.mrf.mxu0
      %v2416 = vadd.f32 0.0, %v2415
      %2417 = vmatmul.bf16.gmra.mxu0 %v2153
      %v2418 = vpop.f32.mrf.mxu0
      %v2419 = vadd.f32 0.0, %v2418
      %v2420 = vpop.f32.mrf.mxu0
      %v2421 = vadd.f32 0.0, %v2420
      %2422 = vmatmul.bf16.gmra.mxu0 %v2156
      %v2423 = vpop.f32.mrf.mxu0
      %v2424 = vadd.f32 0.0, %v2423
      %v2425 = vpop.f32.mrf.mxu0
      %v2426 = vadd.f32 0.0, %v2425
      %2427 = vmatmul.bf16.gmra.mxu0 %v2159
      %v2428 = vpop.f32.mrf.mxu0
      %v2429 = vadd.f32 0.0, %v2428
      %v2430 = vpop.f32.mrf.mxu0
      %v2431 = vadd.f32 0.0, %v2430
      %2432 = vmatmul.bf16.gmra.mxu0 %v2162
      %v2433 = vpop.f32.mrf.mxu0
      %v2434 = vadd.f32 0.0, %v2433
      %v2435 = vpop.f32.mrf.mxu0
      %v2436 = vadd.f32 0.0, %v2435
      %2437 = vmatmul.bf16.gmra.mxu0 %v2165
      %v2438 = vpop.f32.mrf.mxu0
      %v2439 = vadd.f32 0.0, %v2438
      %v2440 = vpop.f32.mrf.mxu0
      %v2441 = vadd.f32 0.0, %v2440
      %2442 = vmatmul.bf16.gmra.mxu0 %v2168
      %v2443 = vpop.f32.mrf.mxu0
      %v2444 = vadd.f32 0.0, %v2443
      %v2445 = vpop.f32.mrf.mxu0
      %v2446 = vadd.f32 0.0, %v2445
      %2447 = vmatmul.bf16.gmra.mxu0 %v2171
      %v2448 = vpop.f32.mrf.mxu0
      %v2449 = vadd.f32 0.0, %v2448
      %v2450 = vpop.f32.mrf.mxu0
      %v2451 = vadd.f32 0.0, %v2450
      %2452 = vmatmul.bf16.gmra.mxu0 %v2174
      %v2453 = vpop.f32.mrf.mxu0
      %v2454 = vadd.f32 0.0, %v2453
      %v2455 = vpop.f32.mrf.mxu0
      %v2456 = vadd.f32 0.0, %v2455
      %2457 = vmatmul.bf16.gmra.mxu0 %v2177
      %v2458 = vpop.f32.mrf.mxu0
      %v2459 = vadd.f32 0.0, %v2458
      %v2460 = vpop.f32.mrf.mxu0
      %v2461 = vadd.f32 0.0, %v2460
      %2462 = vmatmul.bf16.gmra.mxu0 %v2174
      %v2463 = vpop.f32.mrf.mxu0
      %v2464 = vadd.f32 0.0, %v2463
      %v2465 = vpop.f32.mrf.mxu0
      %v2466 = vadd.f32 0.0, %v2465
      %2467 = vdwg.mxu0
      %v2468 = vadd.f32 %v2289, %v2389
      %v2469 = vadd.f32 %v2291, %v2391
      %v2470 = vadd.f32 %v2294, %v2394
      %v2471 = vadd.f32 %v2296, %v2396
      %v2472 = vadd.f32 %v2299, %v2399
      %v2473 = vadd.f32 %v2301, %v2401
      %v2474 = vadd.f32 %v2304, %v2404
      %v2475 = vadd.f32 %v2306, %v2406
      %v2476 = vadd.f32 %v2309, %v2409
      %v2477 = vadd.f32 %v2311, %v2411
      %v2478 = vadd.f32 %v2314, %v2414
      %v2479 = vadd.f32 %v2316, %v2416
      %v2480 = vadd.f32 %v2319, %v2419
      %v2481 = vadd.f32 %v2321, %v2421
      %v2482 = vadd.f32 %v2324, %v2424
      %v2483 = vadd.f32 %v2326, %v2426
      %v2484 = vadd.f32 %v2329, %v2429
      %v2485 = vadd.f32 %v2331, %v2431
      %v2486 = vadd.f32 %v2334, %v2434
      %v2487 = vadd.f32 %v2336, %v2436
      %v2488 = vadd.f32 %v2339, %v2439
      %v2489 = vadd.f32 %v2341, %v2441
      %v2490 = vadd.f32 %v2344, %v2444
      %v2491 = vadd.f32 %v2346, %v2446
      %v2492 = vadd.f32 %v2349, %v2449
      %v2493 = vadd.f32 %v2351, %v2451
      %v2494 = vadd.f32 %v2354, %v2454
      %v2495 = vadd.f32 %v2356, %v2456
      %v2496 = vadd.f32 %v2359, %v2459
      %v2497 = vadd.f32 %v2361, %v2461
      %v2498 = vadd.f32 %v2364, %v2464
      %v2499 = vadd.f32 %v2366, %v2466
      %v2500 = vperm.slane %v1431, 0
      %v2501 = vmul.f32 %v2468, %v2500
      %v2502 = vmul.f32 %v2469, %v2500
      %v2503 = vmul.f32 %v2470, %v2500
      %v2504 = vmul.f32 %v2471, %v2500
      %v2505 = vmul.f32 %v2472, %v2500
      %v2506 = vmul.f32 %v2473, %v2500
      %v2507 = vmul.f32 %v2474, %v2500
      %v2508 = vmul.f32 %v2475, %v2500
      %v2509 = vmul.f32 %v2476, %v2500
      %v2510 = vmul.f32 %v2477, %v2500
      %v2511 = vmul.f32 %v2478, %v2500
      %v2512 = vmul.f32 %v2479, %v2500
      %v2513 = vmul.f32 %v2480, %v2500
      %v2514 = vmul.f32 %v2481, %v2500
      %v2515 = vmul.f32 %v2482, %v2500
      %v2516 = vmul.f32 %v2483, %v2500
      %v2517 = vmul.f32 %v2484, %v2500
      %v2518 = vmul.f32 %v2485, %v2500
      %v2519 = vmul.f32 %v2486, %v2500
      %v2520 = vmul.f32 %v2487, %v2500
      %v2521 = vmul.f32 %v2488, %v2500
      %v2522 = vmul.f32 %v2489, %v2500
      %v2523 = vmul.f32 %v2490, %v2500
      %v2524 = vmul.f32 %v2491, %v2500
      %v2525 = vmul.f32 %v2492, %v2500
      %v2526 = vmul.f32 %v2493, %v2500
      %v2527 = vmul.f32 %v2494, %v2500
      %v2528 = vmul.f32 %v2495, %v2500
      %v2529 = vmul.f32 %v2496, %v2500
      %v2530 = vmul.f32 %v2497, %v2500
      %v2531 = vmul.f32 %v2498, %v2500
      %v2532 = vmul.f32 %v2499, %v2500
      %v2533 = vperm.slane %v1432, 0
      %v2534 = vadd.f32 %v2501, %v2533
      %v2535 = vadd.f32 %v2502, %v2533
      %v2536 = vadd.f32 %v2503, %v2533
      %v2537 = vadd.f32 %v2504, %v2533
      %v2538 = vadd.f32 %v2505, %v2533
      %v2539 = vadd.f32 %v2506, %v2533
      %v2540 = vadd.f32 %v2507, %v2533
      %v2541 = vadd.f32 %v2508, %v2533
      %v2542 = vadd.f32 %v2509, %v2533
      %v2543 = vadd.f32 %v2510, %v2533
      %v2544 = vadd.f32 %v2511, %v2533
      %v2545 = vadd.f32 %v2512, %v2533
      %v2546 = vadd.f32 %v2513, %v2533
      %v2547 = vadd.f32 %v2514, %v2533
      %v2548 = vadd.f32 %v2515, %v2533
      %v2549 = vadd.f32 %v2516, %v2533
      %v2550 = vadd.f32 %v2517, %v2533
      %v2551 = vadd.f32 %v2518, %v2533
      %v2552 = vadd.f32 %v2519, %v2533
      %v2553 = vadd.f32 %v2520, %v2533
      %v2554 = vadd.f32 %v2521, %v2533
      %v2555 = vadd.f32 %v2522, %v2533
      %v2556 = vadd.f32 %v2523, %v2533
      %v2557 = vadd.f32 %v2524, %v2533
      %v2558 = vadd.f32 %v2525, %v2533
      %v2559 = vadd.f32 %v2526, %v2533
      %v2560 = vadd.f32 %v2527, %v2533
      %v2561 = vadd.f32 %v2528, %v2533
      %v2562 = vadd.f32 %v2529, %v2533
      %v2563 = vadd.f32 %v2530, %v2533
      %v2564 = vadd.f32 %v2531, %v2533
      %v2565 = vadd.f32 %v2532, %v2533
      %v2566 = vadd.f32 %v226, %v2534
      %v2567 = vadd.f32 %v227, %v2535
      %v2568 = vadd.f32 %v228, %v2536
      %v2569 = vadd.f32 %v229, %v2537
      %v2570 = vadd.f32 %v230, %v2538
      %v2571 = vadd.f32 %v231, %v2539
      %v2572 = vadd.f32 %v232, %v2540
      %v2573 = vadd.f32 %v233, %v2541
      %v2574 = vadd.f32 %v234, %v2542
      %v2575 = vadd.f32 %v235, %v2543
      %v2576 = vadd.f32 %v236, %v2544
      %v2577 = vadd.f32 %v237, %v2545
      %v2578 = vadd.f32 %v238, %v2546
      %v2579 = vadd.f32 %v239, %v2547
      %v2580 = vadd.f32 %v240, %v2548
      %v2581 = vadd.f32 %v241, %v2549
      %v2582 = vadd.f32 %v242, %v2550
      %v2583 = vadd.f32 %v243, %v2551
      %v2584 = vadd.f32 %v244, %v2552
      %v2585 = vadd.f32 %v245, %v2553
      %v2586 = vadd.f32 %v246, %v2554
      %v2587 = vadd.f32 %v247, %v2555
      %v2588 = vadd.f32 %v248, %v2556
      %v2589 = vadd.f32 %v249, %v2557
      %v2590 = vadd.f32 %v250, %v2558
      %v2591 = vadd.f32 %v251, %v2559
      %v2592 = vadd.f32 %v252, %v2560
      %v2593 = vadd.f32 %v253, %v2561
      %v2594 = vadd.f32 %v254, %v2562
      %v2595 = vadd.f32 %v255, %v2563
      %v2596 = vadd.f32 %v256, %v2564
      %v2597 = vadd.f32 %v257, %v2565
      %2598 = vst.msk [vmem:[%s224] sm:$0xff] %vm871, %v2566
      %2599 = vst.msk [vmem:[%s224 + $0x8] sm:$0xff] %vm871, %v2567
      %2600 = vst.msk [vmem:[%s224 + $0x10] sm:$0xff] %vm871, %v2568
      %2601 = vst.msk [vmem:[%s224 + $0x18] sm:$0xff] %vm871, %v2569
      %2602 = vst.msk [vmem:[%s224 + $0x20] sm:$0xff] %vm871, %v2570
      %2603 = vst.msk [vmem:[%s224 + $0x28] sm:$0xff] %vm871, %v2571
      %2604 = vst.msk [vmem:[%s224 + $0x30] sm:$0xff] %vm871, %v2572
      %2605 = vst.msk [vmem:[%s224 + $0x38] sm:$0xff] %vm871, %v2573
      %2606 = vst.msk [vmem:[%s224 + $0x40] sm:$0xff] %vm871, %v2574
      %2607 = vst.msk [vmem:[%s224 + $0x48] sm:$0xff] %vm871, %v2575
      %2608 = vst.msk [vmem:[%s224 + $0x50] sm:$0xff] %vm871, %v2576
      %2609 = vst.msk [vmem:[%s224 + $0x58] sm:$0xff] %vm871, %v2577
      %2610 = vst.msk [vmem:[%s224 + $0x60] sm:$0xff] %vm871, %v2578
      %2611 = vst.msk [vmem:[%s224 + $0x68] sm:$0xff] %vm871, %v2579
      %2612 = vst.msk [vmem:[%s224 + $0x70] sm:$0xff] %vm871, %v2580
      %2613 = vst.msk [vmem:[%s224 + $0x78] sm:$0xff] %vm871, %v2581
      %2614 = vst.msk [vmem:[%s224 + $0x80] sm:$0xff] %vm871, %v2582
      %2615 = vst.msk [vmem:[%s224 + $0x88] sm:$0xff] %vm871, %v2583
      %2616 = vst.msk [vmem:[%s224 + $0x90] sm:$0xff] %vm871, %v2584
      %2617 = vst.msk [vmem:[%s224 + $0x98] sm:$0xff] %vm871, %v2585
      %2618 = vst.msk [vmem:[%s224 + $0xa0] sm:$0xff] %vm871, %v2586
      %2619 = vst.msk [vmem:[%s224 + $0xa8] sm:$0xff] %vm871, %v2587
      %2620 = vst.msk [vmem:[%s224 + $0xb0] sm:$0xff] %vm871, %v2588
      %2621 = vst.msk [vmem:[%s224 + $0xb8] sm:$0xff] %vm871, %v2589
      %2622 = vst.msk [vmem:[%s224 + $0xc0] sm:$0xff] %vm871, %v2590
      %2623 = vst.msk [vmem:[%s224 + $0xc8] sm:$0xff] %vm871, %v2591
      %2624 = vst.msk [vmem:[%s224 + $0xd0] sm:$0xff] %vm871, %v2592
      %2625 = vst.msk [vmem:[%s224 + $0xd8] sm:$0xff] %vm871, %v2593
      %2626 = vst.msk [vmem:[%s224 + $0xe0] sm:$0xff] %vm871, %v2594
      %2627 = vst.msk [vmem:[%s224 + $0xe8] sm:$0xff] %vm871, %v2595
      %2628 = vst.msk [vmem:[%s224 + $0xf0] sm:$0xff] %vm871, %v2596
      %2629 = vst.msk [vmem:[%s224 + $0xf8] sm:$0xff] %vm871, %v2597
      %p2630 = scmp.lt.s32.totalorder %s16, 1
      %s2631 = scalar_select %p2630, %s16, 1
      %s2632 = smul.addr %s2631, 32
      %s2633 = smul.addr %s2632, 8
      %s2634 = scalar_lea.vmem %s5, %s2633
      // Predicated region
      $region41: #{tpu_custom_call.1} parent=39 // pred_check
        %p2635 = pneg %p144
      $region42: #{tpu_custom_call.1} parent=39 // pred_check_branch
        %2637 = sbr.rel (%p2635) target = $region44
      $region43: #{tpu_custom_call.1} parent=39 // pred_region
        _
      $region44: #{tpu_custom_call.1} parent=39 // pred_fallthru
        _
    $region40: #{tpu_custom_call.1} parent=5 // pred_fallthru
      _
    %p2638 = scmp.le.s32.totalorder 2, %s11
    // Predicated region
    $region45: #{tpu_custom_call.1} parent=5 // pred_check
      %p2639 = pneg %p2638
    $region46: #{tpu_custom_call.1} parent=5 // pred_check_branch
      %2641 = sbr.rel (%p2639) target = $region48
    $region47: #{tpu_custom_call.1} parent=5 // pred_region
      %s2642 = ssub.s32 %s11, 2
      // Predicated region
      $region49: #{tpu_custom_call.1} parent=47 // pred_check
        %p2643 = pneg %p150
      $region50: #{tpu_custom_call.1} parent=47 // pred_check_branch
        %2645 = sbr.rel (%p2643) target = $region52
      $region51: #{tpu_custom_call.1} parent=47 // pred_region
        %p2646 = scmp.lt.s32.totalorder %s17, 1
        %s2647 = scalar_select %p2646, %s17, 1
        %s2648 = smul.addr %s2647, 32
        %s2649 = smul.addr %s2648, 8
        %s2650 = scalar_lea.vmem %s5, %s2649
      $region52: #{tpu_custom_call.1} parent=47 // pred_fallthru
        _
    $region48: #{tpu_custom_call.1} parent=5 // pred_fallthru
      _
  $region6: #{tpu_custom_call.1} parent=0 // loop_footer
    %s15 = sadd.s32 1, %s11
  $region7: #{tpu_custom_call.1} parent=0 // loop_footer_branch
    %10 = sbr.rel target = $region3
  $region8: #{tpu_custom_call.1} parent=0 // loop_exit
    _

</llo_original>
